<compile_context>
chip_gen: v7x
topology: tpu7x:2x2x1
jax: 0.10.0
libtpu: 0.0.40
codegen_flags: <defaults>
</compile_context>

<pallas_src>
import functools

import jax
import jax.numpy as jnp
import numpy as np
from jax.experimental import pallas as pl
from jax.experimental.pallas import tpu as pltpu


# -----------------------------------------------------------------------------
# Fused Pallas kernel: all levels + linear head + log_softmax
# -----------------------------------------------------------------------------
def _tcn_fused_kernel(cfg, kernel_size, *refs):
    """cfg: tuple of dicts {'dilation': int, 'has_down': bool}, one per level.

    refs layout:
      x_ref                                   (B, L, C_in)
      per level: w1_col, b1, w2_col, b2 [, wd, bd]
                 w*_col : (K*C_in, C_out) im2col-reshaped weights
                 b*     : (1, C_out)
                 wd     : (C_in, C_out)   (1x1 downsample, only if has_down)
      w_lin (C_last, n_cls), b_lin (1, n_cls)
      out_ref (B, n_cls)
    """
    x_ref = refs[0]
    idx = 1
    level_refs = []
    for lv in cfg:
        n = 6 if lv["has_down"] else 4
        level_refs.append(refs[idx:idx + n])
        idx += n
    w_lin_ref, b_lin_ref, out_ref = refs[idx], refs[idx + 1], refs[idx + 2]

    B, L, _ = x_ref.shape
    K = kernel_size
    x = x_ref[...]                                        # (B, L, C_in) value

    for lv, lrefs in zip(cfg, level_refs):
        d = lv["dilation"]
        if lv["has_down"]:
            w1_ref, b1_ref, w2_ref, b2_ref, wd_ref, bd_ref = lrefs
        else:
            w1_ref, b1_ref, w2_ref, b2_ref = lrefs
            wd_ref = bd_ref = None

        def causal_conv(inp, w_col, bias, dil=d):
            # out[t] = sum_k inp[t - (K-1-k)*dil] @ w[k]  (causal, zero history)
            Bc, Lc, Cc = inp.shape
            cols = []
            for k in range(K):
                s = (K - 1 - k) * dil                     # static shift
                if s == 0:
                    xs = inp
                elif s >= Lc:
                    xs = jnp.zeros_like(inp)
                else:
                    xs = jnp.concatenate(
                        [jnp.zeros((Bc, s, Cc), inp.dtype),
                         inp[:, :Lc - s, :]], axis=1)
                cols.append(xs)
            # im2col: one matmul with M = B*L, contraction = K*C
            xcol = jnp.concatenate(cols, axis=-1).reshape(Bc * Lc, K * Cc)
            y = jnp.dot(xcol, w_col, preferred_element_type=jnp.float32) + bias
            return y.reshape(Bc, Lc, w_col.shape[-1])

        h = jnp.maximum(causal_conv(x, w1_ref[...], b1_ref[...]), 0.0)
        h = jnp.maximum(causal_conv(h, w2_ref[...], b2_ref[...]), 0.0)

        if wd_ref is not None:                            # 1x1 downsample conv
            c_in = x.shape[-1]
            res = (jnp.dot(x.reshape(B * L, c_in), wd_ref[...],
                           preferred_element_type=jnp.float32)
                   + bd_ref[...]).reshape(B, L, -1)
        else:
            res = x
        x = jnp.maximum(h + res, 0.0)                     # residual + ReLU

    # ---- classifier head on the last time step + log_softmax ----
    feat = x[:, L - 1, :]                                 # (B, C_last)
    logits = jnp.dot(feat, w_lin_ref[...],
                     preferred_element_type=jnp.float32) + b_lin_ref[...]
    m = jnp.max(logits, axis=-1, keepdims=True)
    z = jnp.sum(jnp.exp(logits - m), axis=-1, keepdims=True)
    out_ref[...] = logits - m - jnp.log(z)


# -----------------------------------------------------------------------------
# Wrapper: one pallas_call for the whole network
# -----------------------------------------------------------------------------
def tcn_forward(x_ncw, params, *, kernel_size):
    """x_ncw: (B, C_in, L) like the PyTorch module.  Returns (B, output_size)."""
    x = jnp.transpose(x_ncw, (0, 2, 1)).astype(jnp.float32)   # -> (B, L, C_in)
    B, L, _ = x.shape
    n_cls = params["w_lin"].shape[-1]

    cfg = []
    args = [x]
    for blk in params["blocks"]:
        K, c_in, c_mid = blk["w1"].shape
        c_out = blk["w2"].shape[-1]
        has_down = blk["wd"] is not None
        cfg.append(dict(dilation=int(blk["dilation"]), has_down=has_down))
        args += [blk["w1"].reshape(K * c_in, c_mid),    # im2col weight layout
                 blk["b1"].reshape(1, -1),
                 blk["w2"].reshape(K * c_mid, c_out),
                 blk["b2"].reshape(1, -1)]
        if has_down:
            args += [blk["wd"], blk["bd"].reshape(1, -1)]
    args += [params["w_lin"], params["b_lin"].reshape(1, -1)]

    kernel = functools.partial(_tcn_fused_kernel, tuple(cfg), kernel_size)
    return pl.pallas_call(
        kernel,
        out_shape=jax.ShapeDtypeStruct((B, n_cls), jnp.float32),
        in_specs=[pl.BlockSpec(memory_space=pltpu.MemorySpace.VMEM)] * len(args),
        out_specs=pl.BlockSpec(memory_space=pltpu.MemorySpace.VMEM),
    )(*args)


# -----------------------------------------------------------------------------
# Deterministic synthetic parameters (weight_norm reparam applied in glue)
# -----------------------------------------------------------------------------
def make_params(key, input_size, output_size, num_channels, kernel_size):
    blocks = []
    for i, n_out in enumerate(num_channels):
        n_in = input_size if i == 0 else num_channels[i - 1]
        key, k1, k2, k3, k4, k5, k6 = jax.random.split(key, 7)

        def wn_conv_weight(k, c_out, c_in):
            # weight_norm(Conv1d): W = g * v / ||v||, with ||.|| over (in, k)
            v = 0.01 * jax.random.normal(k, (c_out, c_in, kernel_size),
                                         jnp.float32)
            norm = jnp.sqrt(jnp.sum(v * v, axis=(1, 2), keepdims=True))
            g = norm                              # default weight_norm init
            w = g * v / norm                      # (c_out, c_in, K)
            return jnp.transpose(w, (2, 1, 0))    # -> (K, c_in, c_out)

        w1 = wn_conv_weight(k1, n_out, n_in)
        b1 = 0.01 * jax.random.normal(k2, (n_out,), jnp.float32)
        w2 = wn_conv_weight(k3, n_out, n_out)
        b2 = 0.01 * jax.random.normal(k4, (n_out,), jnp.float32)
        if n_in != n_out:
            wd = 0.01 * jax.random.normal(k5, (n_in, n_out), jnp.float32)
            bd = 0.01 * jax.random.normal(k6, (n_out,), jnp.float32)
        else:
            wd, bd = None, None
        blocks.append(dict(w1=w1, b1=b1, w2=w2, b2=b2, wd=wd, bd=bd,
                           dilation=2 ** i))

    key, k7, k8 = jax.random.split(key, 3)
    w_lin = 0.01 * jax.random.normal(k7, (num_channels[-1], output_size),
                                     jnp.float32)
    b_lin = 0.01 * jax.random.normal(k8, (output_size,), jnp.float32)
    return dict(blocks=blocks, w_lin=w_lin, b_lin=b_lin)


# -----------------------------------------------------------------------------
# Pure-JAX reference (lax conv) used only for a correctness check
# -----------------------------------------------------------------------------
def ref_forward(x_ncw, params, *, kernel_size):
    x = x_ncw.astype(jnp.float32)
    for blk in params["blocks"]:
        d = blk["dilation"]
        pad = (kernel_size - 1) * d

        def conv(inp, w_kio, b):
            w_oik = jnp.transpose(w_kio, (2, 1, 0))        # (O, I, K)
            y = jax.lax.conv_general_dilated(
                inp, w_oik, window_strides=(1,), padding=((pad, pad),),
                rhs_dilation=(d,), dimension_numbers=("NCH", "OIH", "NCH"))
            y = y[:, :, :-pad]                              # Chomp1d
            return y + b[None, :, None]

        out = jax.nn.relu(conv(x, blk["w1"], blk["b1"]))
        out = jax.nn.relu(conv(out, blk["w2"], blk["b2"]))
        if blk["wd"] is not None:
            res = jnp.einsum("io,bil->bol", blk["wd"], x) + blk["bd"][None, :, None]
        else:
            res = x
        x = jax.nn.relu(out + res)
    logits = x[:, :, -1] @ params["w_lin"] + params["b_lin"]
    return jax.nn.log_softmax(logits, axis=1)


# -----------------------------------------------------------------------------
if __name__ == "__main__":
    # Small shapes consistent with TCN(input_size, output_size, num_channels, K)
    B, L = 2, 16
    input_size, output_size = 4, 10
    num_channels = [8, 8, 8]
    kernel_size = 3

    key = jax.random.PRNGKey(0)
    kp, kx = jax.random.split(key)
    params = make_params(kp, input_size, output_size, num_channels, kernel_size)
    x = jax.random.normal(kx, (B, input_size, L), jnp.float32)   # NCW like PyTorch

    # TODO(synk): dropout (p=0.0) is an identity at inference and is omitted.
    out = tcn_forward(x, params, kernel_size=kernel_size)
    out = jax.block_until_ready(out)

    ref = jax.block_until_ready(ref_forward(x, params, kernel_size=kernel_size))
    np.testing.assert_allclose(np.asarray(out), np.asarray(ref),
                               rtol=1e-4, atol=1e-5)
    print("KERNEL_OK")
</pallas_src>

<mosaic_0001>
module attributes {stable_mosaic.version = 11 : i64} {
  func.func @_tcn_fused_kernel(%arg0: memref<2x16x4xf32, #tpu.memory_space<vmem>>, %arg1: memref<12x8xf32, #tpu.memory_space<vmem>>, %arg2: memref<1x8xf32, #tpu.memory_space<vmem>>, %arg3: memref<24x8xf32, #tpu.memory_space<vmem>>, %arg4: memref<1x8xf32, #tpu.memory_space<vmem>>, %arg5: memref<4x8xf32, #tpu.memory_space<vmem>>, %arg6: memref<1x8xf32, #tpu.memory_space<vmem>>, %arg7: memref<24x8xf32, #tpu.memory_space<vmem>>, %arg8: memref<1x8xf32, #tpu.memory_space<vmem>>, %arg9: memref<24x8xf32, #tpu.memory_space<vmem>>, %arg10: memref<1x8xf32, #tpu.memory_space<vmem>>, %arg11: memref<24x8xf32, #tpu.memory_space<vmem>>, %arg12: memref<1x8xf32, #tpu.memory_space<vmem>>, %arg13: memref<24x8xf32, #tpu.memory_space<vmem>>, %arg14: memref<1x8xf32, #tpu.memory_space<vmem>>, %arg15: memref<8x10xf32, #tpu.memory_space<vmem>>, %arg16: memref<1x10xf32, #tpu.memory_space<vmem>>, %arg17: memref<2x10xf32, #tpu.memory_space<vmem>>) attributes {dimension_semantics = [], scalar_prefetch = 0 : i64, scratch_operands = 0 : i64, tpu.core_type = #tpu.core_type<tc>} {
    %c0 = arith.constant 0 : index
    %c0_0 = arith.constant 0 : index
    %c0_1 = arith.constant 0 : index
    %0 = vector.load %arg0[%c0, %c0_0, %c0_1] : memref<2x16x4xf32, #tpu.memory_space<vmem>>, vector<2x16x4xf32>
    %c0_2 = arith.constant 0 : index
    %c0_3 = arith.constant 0 : index
    %1 = vector.load %arg1[%c0_2, %c0_3] : memref<12x8xf32, #tpu.memory_space<vmem>>, vector<12x8xf32>
    %c0_4 = arith.constant 0 : index
    %c0_5 = arith.constant 0 : index
    %2 = vector.load %arg2[%c0_4, %c0_5] : memref<1x8xf32, #tpu.memory_space<vmem>>, vector<1x8xf32>
    %cst = arith.constant 0.000000e+00 : f32
    %3 = vector.broadcast %cst : f32 to vector<2x2x4xf32>
    %4 = vector.extract_strided_slice %0 {offsets = [0, 0, 0], sizes = [2, 14, 4], strides = [1, 1, 1]} : vector<2x16x4xf32> to vector<2x14x4xf32>
    %5 = tpu.concatenate %3, %4 in 1 : vector<2x2x4xf32>, vector<2x14x4xf32> -> vector<2x16x4xf32>
    %cst_6 = arith.constant 0.000000e+00 : f32
    %6 = vector.broadcast %cst_6 : f32 to vector<2x1x4xf32>
    %7 = vector.extract_strided_slice %0 {offsets = [0, 0, 0], sizes = [2, 15, 4], strides = [1, 1, 1]} : vector<2x16x4xf32> to vector<2x15x4xf32>
    %8 = tpu.concatenate %6, %7 in 1 : vector<2x1x4xf32>, vector<2x15x4xf32> -> vector<2x16x4xf32>
    %9 = tpu.concatenate %5, %8, %0 in 2 : vector<2x16x4xf32>, vector<2x16x4xf32>, vector<2x16x4xf32> -> vector<2x16x12xf32>
    %10 = vector.shape_cast %9 : vector<2x16x12xf32> to vector<32x12xf32>
    %cst_7 = arith.constant dense<0.000000e+00> : vector<32x8xf32>
    %11 = tpu.matmul %10, %1, %cst_7 {dimension_numbers = #tpu.dot_dimension_numbers<[1], [0], [0], [1], [0, 0, 1, 1], [], []>} : vector<32x12xf32>, vector<12x8xf32>, vector<32x8xf32> -> vector<32x8xf32>
    %12 = vector.broadcast %2 : vector<1x8xf32> to vector<32x8xf32>
    %13 = arith.addf %11, %12 : vector<32x8xf32>
    %14 = vector.shape_cast %13 : vector<32x8xf32> to vector<2x16x8xf32>
    %cst_8 = arith.constant 0.000000e+00 : f32
    %15 = vector.broadcast %cst_8 : f32 to vector<2x16x8xf32>
    %16 = arith.maximumf %14, %15 : vector<2x16x8xf32>
    %c0_9 = arith.constant 0 : index
    %c0_10 = arith.constant 0 : index
    %17 = vector.load %arg3[%c0_9, %c0_10] : memref<24x8xf32, #tpu.memory_space<vmem>>, vector<24x8xf32>
    %c0_11 = arith.constant 0 : index
    %c0_12 = arith.constant 0 : index
    %18 = vector.load %arg4[%c0_11, %c0_12] : memref<1x8xf32, #tpu.memory_space<vmem>>, vector<1x8xf32>
    %cst_13 = arith.constant 0.000000e+00 : f32
    %19 = vector.broadcast %cst_13 : f32 to vector<2x2x8xf32>
    %20 = vector.extract_strided_slice %16 {offsets = [0, 0, 0], sizes = [2, 14, 8], strides = [1, 1, 1]} : vector<2x16x8xf32> to vector<2x14x8xf32>
    %21 = tpu.concatenate %19, %20 in 1 : vector<2x2x8xf32>, vector<2x14x8xf32> -> vector<2x16x8xf32>
    %cst_14 = arith.constant 0.000000e+00 : f32
    %22 = vector.broadcast %cst_14 : f32 to vector<2x1x8xf32>
    %23 = vector.extract_strided_slice %16 {offsets = [0, 0, 0], sizes = [2, 15, 8], strides = [1, 1, 1]} : vector<2x16x8xf32> to vector<2x15x8xf32>
    %24 = tpu.concatenate %22, %23 in 1 : vector<2x1x8xf32>, vector<2x15x8xf32> -> vector<2x16x8xf32>
    %25 = tpu.concatenate %21, %24, %16 in 2 : vector<2x16x8xf32>, vector<2x16x8xf32>, vector<2x16x8xf32> -> vector<2x16x24xf32>
    %26 = vector.shape_cast %25 : vector<2x16x24xf32> to vector<32x24xf32>
    %cst_15 = arith.constant dense<0.000000e+00> : vector<32x8xf32>
    %27 = tpu.matmul %26, %17, %cst_15 {dimension_numbers = #tpu.dot_dimension_numbers<[1], [0], [0], [1], [0, 0, 1, 1], [], []>} : vector<32x24xf32>, vector<24x8xf32>, vector<32x8xf32> -> vector<32x8xf32>
    %28 = vector.broadcast %18 : vector<1x8xf32> to vector<32x8xf32>
    %29 = arith.addf %27, %28 : vector<32x8xf32>
    %30 = vector.shape_cast %29 : vector<32x8xf32> to vector<2x16x8xf32>
    %cst_16 = arith.constant 0.000000e+00 : f32
    %31 = vector.broadcast %cst_16 : f32 to vector<2x16x8xf32>
    %32 = arith.maximumf %30, %31 : vector<2x16x8xf32>
    %33 = vector.shape_cast %0 : vector<2x16x4xf32> to vector<32x4xf32>
    %c0_17 = arith.constant 0 : index
    %c0_18 = arith.constant 0 : index
    %34 = vector.load %arg5[%c0_17, %c0_18] : memref<4x8xf32, #tpu.memory_space<vmem>>, vector<4x8xf32>
    %cst_19 = arith.constant dense<0.000000e+00> : vector<32x8xf32>
    %35 = tpu.matmul %33, %34, %cst_19 {dimension_numbers = #tpu.dot_dimension_numbers<[1], [0], [0], [1], [0, 0, 1, 1], [], []>} : vector<32x4xf32>, vector<4x8xf32>, vector<32x8xf32> -> vector<32x8xf32>
    %c0_20 = arith.constant 0 : index
    %c0_21 = arith.constant 0 : index
    %36 = vector.load %arg6[%c0_20, %c0_21] : memref<1x8xf32, #tpu.memory_space<vmem>>, vector<1x8xf32>
    %37 = vector.broadcast %36 : vector<1x8xf32> to vector<32x8xf32>
    %38 = arith.addf %35, %37 : vector<32x8xf32>
    %39 = vector.shape_cast %38 : vector<32x8xf32> to vector<2x16x8xf32>
    %40 = arith.addf %32, %39 : vector<2x16x8xf32>
    %cst_22 = arith.constant 0.000000e+00 : f32
    %41 = vector.broadcast %cst_22 : f32 to vector<2x16x8xf32>
    %42 = arith.maximumf %40, %41 : vector<2x16x8xf32>
    %c0_23 = arith.constant 0 : index
    %c0_24 = arith.constant 0 : index
    %43 = vector.load %arg7[%c0_23, %c0_24] : memref<24x8xf32, #tpu.memory_space<vmem>>, vector<24x8xf32>
    %c0_25 = arith.constant 0 : index
    %c0_26 = arith.constant 0 : index
    %44 = vector.load %arg8[%c0_25, %c0_26] : memref<1x8xf32, #tpu.memory_space<vmem>>, vector<1x8xf32>
    %cst_27 = arith.constant 0.000000e+00 : f32
    %45 = vector.broadcast %cst_27 : f32 to vector<2x4x8xf32>
    %46 = vector.extract_strided_slice %42 {offsets = [0, 0, 0], sizes = [2, 12, 8], strides = [1, 1, 1]} : vector<2x16x8xf32> to vector<2x12x8xf32>
    %47 = tpu.concatenate %45, %46 in 1 : vector<2x4x8xf32>, vector<2x12x8xf32> -> vector<2x16x8xf32>
    %cst_28 = arith.constant 0.000000e+00 : f32
    %48 = vector.broadcast %cst_28 : f32 to vector<2x2x8xf32>
    %49 = vector.extract_strided_slice %42 {offsets = [0, 0, 0], sizes = [2, 14, 8], strides = [1, 1, 1]} : vector<2x16x8xf32> to vector<2x14x8xf32>
    %50 = tpu.concatenate %48, %49 in 1 : vector<2x2x8xf32>, vector<2x14x8xf32> -> vector<2x16x8xf32>
    %51 = tpu.concatenate %47, %50, %42 in 2 : vector<2x16x8xf32>, vector<2x16x8xf32>, vector<2x16x8xf32> -> vector<2x16x24xf32>
    %52 = vector.shape_cast %51 : vector<2x16x24xf32> to vector<32x24xf32>
    %cst_29 = arith.constant dense<0.000000e+00> : vector<32x8xf32>
    %53 = tpu.matmul %52, %43, %cst_29 {dimension_numbers = #tpu.dot_dimension_numbers<[1], [0], [0], [1], [0, 0, 1, 1], [], []>} : vector<32x24xf32>, vector<24x8xf32>, vector<32x8xf32> -> vector<32x8xf32>
    %54 = vector.broadcast %44 : vector<1x8xf32> to vector<32x8xf32>
    %55 = arith.addf %53, %54 : vector<32x8xf32>
    %56 = vector.shape_cast %55 : vector<32x8xf32> to vector<2x16x8xf32>
    %cst_30 = arith.constant 0.000000e+00 : f32
    %57 = vector.broadcast %cst_30 : f32 to vector<2x16x8xf32>
    %58 = arith.maximumf %56, %57 : vector<2x16x8xf32>
    %c0_31 = arith.constant 0 : index
    %c0_32 = arith.constant 0 : index
    %59 = vector.load %arg9[%c0_31, %c0_32] : memref<24x8xf32, #tpu.memory_space<vmem>>, vector<24x8xf32>
    %c0_33 = arith.constant 0 : index
    %c0_34 = arith.constant 0 : index
    %60 = vector.load %arg10[%c0_33, %c0_34] : memref<1x8xf32, #tpu.memory_space<vmem>>, vector<1x8xf32>
    %cst_35 = arith.constant 0.000000e+00 : f32
    %61 = vector.broadcast %cst_35 : f32 to vector<2x4x8xf32>
    %62 = vector.extract_strided_slice %58 {offsets = [0, 0, 0], sizes = [2, 12, 8], strides = [1, 1, 1]} : vector<2x16x8xf32> to vector<2x12x8xf32>
    %63 = tpu.concatenate %61, %62 in 1 : vector<2x4x8xf32>, vector<2x12x8xf32> -> vector<2x16x8xf32>
    %cst_36 = arith.constant 0.000000e+00 : f32
    %64 = vector.broadcast %cst_36 : f32 to vector<2x2x8xf32>
    %65 = vector.extract_strided_slice %58 {offsets = [0, 0, 0], sizes = [2, 14, 8], strides = [1, 1, 1]} : vector<2x16x8xf32> to vector<2x14x8xf32>
    %66 = tpu.concatenate %64, %65 in 1 : vector<2x2x8xf32>, vector<2x14x8xf32> -> vector<2x16x8xf32>
    %67 = tpu.concatenate %63, %66, %58 in 2 : vector<2x16x8xf32>, vector<2x16x8xf32>, vector<2x16x8xf32> -> vector<2x16x24xf32>
    %68 = vector.shape_cast %67 : vector<2x16x24xf32> to vector<32x24xf32>
    %cst_37 = arith.constant dense<0.000000e+00> : vector<32x8xf32>
    %69 = tpu.matmul %68, %59, %cst_37 {dimension_numbers = #tpu.dot_dimension_numbers<[1], [0], [0], [1], [0, 0, 1, 1], [], []>} : vector<32x24xf32>, vector<24x8xf32>, vector<32x8xf32> -> vector<32x8xf32>
    %70 = vector.broadcast %60 : vector<1x8xf32> to vector<32x8xf32>
    %71 = arith.addf %69, %70 : vector<32x8xf32>
    %72 = vector.shape_cast %71 : vector<32x8xf32> to vector<2x16x8xf32>
    %cst_38 = arith.constant 0.000000e+00 : f32
    %73 = vector.broadcast %cst_38 : f32 to vector<2x16x8xf32>
    %74 = arith.maximumf %72, %73 : vector<2x16x8xf32>
    %75 = arith.addf %74, %42 : vector<2x16x8xf32>
    %cst_39 = arith.constant 0.000000e+00 : f32
    %76 = vector.broadcast %cst_39 : f32 to vector<2x16x8xf32>
    %77 = arith.maximumf %75, %76 : vector<2x16x8xf32>
    %c0_40 = arith.constant 0 : index
    %c0_41 = arith.constant 0 : index
    %78 = vector.load %arg11[%c0_40, %c0_41] : memref<24x8xf32, #tpu.memory_space<vmem>>, vector<24x8xf32>
    %c0_42 = arith.constant 0 : index
    %c0_43 = arith.constant 0 : index
    %79 = vector.load %arg12[%c0_42, %c0_43] : memref<1x8xf32, #tpu.memory_space<vmem>>, vector<1x8xf32>
    %cst_44 = arith.constant 0.000000e+00 : f32
    %80 = vector.broadcast %cst_44 : f32 to vector<2x8x8xf32>
    %81 = vector.extract_strided_slice %77 {offsets = [0, 0, 0], sizes = [2, 8, 8], strides = [1, 1, 1]} : vector<2x16x8xf32> to vector<2x8x8xf32>
    %82 = tpu.concatenate %80, %81 in 1 : vector<2x8x8xf32>, vector<2x8x8xf32> -> vector<2x16x8xf32>
    %cst_45 = arith.constant 0.000000e+00 : f32
    %83 = vector.broadcast %cst_45 : f32 to vector<2x4x8xf32>
    %84 = vector.extract_strided_slice %77 {offsets = [0, 0, 0], sizes = [2, 12, 8], strides = [1, 1, 1]} : vector<2x16x8xf32> to vector<2x12x8xf32>
    %85 = tpu.concatenate %83, %84 in 1 : vector<2x4x8xf32>, vector<2x12x8xf32> -> vector<2x16x8xf32>
    %86 = tpu.concatenate %82, %85, %77 in 2 : vector<2x16x8xf32>, vector<2x16x8xf32>, vector<2x16x8xf32> -> vector<2x16x24xf32>
    %87 = vector.shape_cast %86 : vector<2x16x24xf32> to vector<32x24xf32>
    %cst_46 = arith.constant dense<0.000000e+00> : vector<32x8xf32>
    %88 = tpu.matmul %87, %78, %cst_46 {dimension_numbers = #tpu.dot_dimension_numbers<[1], [0], [0], [1], [0, 0, 1, 1], [], []>} : vector<32x24xf32>, vector<24x8xf32>, vector<32x8xf32> -> vector<32x8xf32>
    %89 = vector.broadcast %79 : vector<1x8xf32> to vector<32x8xf32>
    %90 = arith.addf %88, %89 : vector<32x8xf32>
    %91 = vector.shape_cast %90 : vector<32x8xf32> to vector<2x16x8xf32>
    %cst_47 = arith.constant 0.000000e+00 : f32
    %92 = vector.broadcast %cst_47 : f32 to vector<2x16x8xf32>
    %93 = arith.maximumf %91, %92 : vector<2x16x8xf32>
    %c0_48 = arith.constant 0 : index
    %c0_49 = arith.constant 0 : index
    %94 = vector.load %arg13[%c0_48, %c0_49] : memref<24x8xf32, #tpu.memory_space<vmem>>, vector<24x8xf32>
    %c0_50 = arith.constant 0 : index
    %c0_51 = arith.constant 0 : index
    %95 = vector.load %arg14[%c0_50, %c0_51] : memref<1x8xf32, #tpu.memory_space<vmem>>, vector<1x8xf32>
    %cst_52 = arith.constant 0.000000e+00 : f32
    %96 = vector.broadcast %cst_52 : f32 to vector<2x8x8xf32>
    %97 = vector.extract_strided_slice %93 {offsets = [0, 0, 0], sizes = [2, 8, 8], strides = [1, 1, 1]} : vector<2x16x8xf32> to vector<2x8x8xf32>
    %98 = tpu.concatenate %96, %97 in 1 : vector<2x8x8xf32>, vector<2x8x8xf32> -> vector<2x16x8xf32>
    %cst_53 = arith.constant 0.000000e+00 : f32
    %99 = vector.broadcast %cst_53 : f32 to vector<2x4x8xf32>
    %100 = vector.extract_strided_slice %93 {offsets = [0, 0, 0], sizes = [2, 12, 8], strides = [1, 1, 1]} : vector<2x16x8xf32> to vector<2x12x8xf32>
    %101 = tpu.concatenate %99, %100 in 1 : vector<2x4x8xf32>, vector<2x12x8xf32> -> vector<2x16x8xf32>
    %102 = tpu.concatenate %98, %101, %93 in 2 : vector<2x16x8xf32>, vector<2x16x8xf32>, vector<2x16x8xf32> -> vector<2x16x24xf32>
    %103 = vector.shape_cast %102 : vector<2x16x24xf32> to vector<32x24xf32>
    %cst_54 = arith.constant dense<0.000000e+00> : vector<32x8xf32>
    %104 = tpu.matmul %103, %94, %cst_54 {dimension_numbers = #tpu.dot_dimension_numbers<[1], [0], [0], [1], [0, 0, 1, 1], [], []>} : vector<32x24xf32>, vector<24x8xf32>, vector<32x8xf32> -> vector<32x8xf32>
    %105 = vector.broadcast %95 : vector<1x8xf32> to vector<32x8xf32>
    %106 = arith.addf %104, %105 : vector<32x8xf32>
    %107 = vector.shape_cast %106 : vector<32x8xf32> to vector<2x16x8xf32>
    %cst_55 = arith.constant 0.000000e+00 : f32
    %108 = vector.broadcast %cst_55 : f32 to vector<2x16x8xf32>
    %109 = arith.maximumf %107, %108 : vector<2x16x8xf32>
    %110 = arith.addf %109, %77 : vector<2x16x8xf32>
    %cst_56 = arith.constant 0.000000e+00 : f32
    %111 = vector.broadcast %cst_56 : f32 to vector<2x16x8xf32>
    %112 = arith.maximumf %110, %111 : vector<2x16x8xf32>
    %113 = vector.extract_strided_slice %112 {offsets = [0, 15, 0], sizes = [2, 1, 8], strides = [1, 1, 1]} : vector<2x16x8xf32> to vector<2x1x8xf32>
    %114 = vector.shape_cast %113 : vector<2x1x8xf32> to vector<2x8xf32>
    %c0_57 = arith.constant 0 : index
    %c0_58 = arith.constant 0 : index
    %115 = vector.load %arg15[%c0_57, %c0_58] : memref<8x10xf32, #tpu.memory_space<vmem>>, vector<8x10xf32>
    %cst_59 = arith.constant dense<0.000000e+00> : vector<2x10xf32>
    %116 = tpu.matmul %114, %115, %cst_59 {dimension_numbers = #tpu.dot_dimension_numbers<[1], [0], [0], [1], [0, 0, 1, 1], [], []>} : vector<2x8xf32>, vector<8x10xf32>, vector<2x10xf32> -> vector<2x10xf32>
    %c0_60 = arith.constant 0 : index
    %c0_61 = arith.constant 0 : index
    %117 = vector.load %arg16[%c0_60, %c0_61] : memref<1x10xf32, #tpu.memory_space<vmem>>, vector<1x10xf32>
    %118 = vector.broadcast %117 : vector<1x10xf32> to vector<2x10xf32>
    %119 = arith.addf %116, %118 : vector<2x10xf32>
    %cst_62 = arith.constant dense<0xFF800000> : vector<2xf32>
    %120 = vector.multi_reduction <maximumf>, %119, %cst_62 [1] : vector<2x10xf32> to vector<2xf32>
    %121 = vector.shape_cast %120 : vector<2xf32> to vector<2x1xf32>
    %122 = vector.broadcast %121 : vector<2x1xf32> to vector<2x10xf32>
    %123 = arith.subf %119, %122 : vector<2x10xf32>
    %124 = math.exp %123 : vector<2x10xf32>
    %cst_63 = arith.constant dense<0.000000e+00> : vector<2xf32>
    %125 = vector.multi_reduction <add>, %124, %cst_63 [1] : vector<2x10xf32> to vector<2xf32>
    %126 = vector.shape_cast %125 : vector<2xf32> to vector<2x1xf32>
    %127 = vector.broadcast %121 : vector<2x1xf32> to vector<2x10xf32>
    %128 = arith.subf %119, %127 : vector<2x10xf32>
    %129 = math.log %126 : vector<2x1xf32>
    %130 = vector.broadcast %129 : vector<2x1xf32> to vector<2x10xf32>
    %131 = arith.subf %128, %130 : vector<2x10xf32>
    %c0_64 = arith.constant 0 : index
    %c0_65 = arith.constant 0 : index
    %132 = vector.load %arg17[%c0_64, %c0_65] : memref<2x10xf32, #tpu.memory_space<vmem>>, vector<2x10xf32>
    tpu.vector_store %arg17[%c0_64, %c0_65], %131 {strides = array<i32>} : memref<2x10xf32, #tpu.memory_space<vmem>>, vector<2x10xf32>,
    return
  }
}

</mosaic_0001>

<llo_original>
// kernel: tpu_custom_call.1
$region0: #{tpu_custom_call.1}
  #allocation0 [shape = 'u32[]', space=smem, size = 0x4, offset = 0x4, fixed_abs, tag = 'smem constant byte address 0x4 - core index']
  #allocation1 [shape = 'u32[144,128]{1,0:T(1,128)}', space=vmem, size = 0x12000, scoped, tag = 'internal scratch']
  %s0 = inlined_call_operand.vmem [shape: f32[2,16,4], index: 0, kind: input, shape index: {}]
  %s1 = inlined_call_operand.vmem [shape: f32[12,8], index: 1, kind: input, shape index: {}]
  %s2 = inlined_call_operand.vmem [shape: f32[1,8], index: 2, kind: input, shape index: {}]
  %s3 = inlined_call_operand.vmem [shape: f32[24,8], index: 3, kind: input, shape index: {}]
  %s4 = inlined_call_operand.vmem [shape: f32[1,8], index: 4, kind: input, shape index: {}]
  %s5 = inlined_call_operand.vmem [shape: f32[4,8], index: 5, kind: input, shape index: {}]
  %s6 = inlined_call_operand.vmem [shape: f32[1,8], index: 6, kind: input, shape index: {}]
  %s7 = inlined_call_operand.vmem [shape: f32[24,8], index: 7, kind: input, shape index: {}]
  %s8 = inlined_call_operand.vmem [shape: f32[1,8], index: 8, kind: input, shape index: {}]
  %s9 = inlined_call_operand.vmem [shape: f32[24,8], index: 9, kind: input, shape index: {}]
  %s10 = inlined_call_operand.vmem [shape: f32[1,8], index: 10, kind: input, shape index: {}]
  %s11 = inlined_call_operand.vmem [shape: f32[24,8], index: 11, kind: input, shape index: {}]
  %s12 = inlined_call_operand.vmem [shape: f32[1,8], index: 12, kind: input, shape index: {}]
  %s13 = inlined_call_operand.vmem [shape: f32[24,8], index: 13, kind: input, shape index: {}]
  %s14 = inlined_call_operand.vmem [shape: f32[1,8], index: 14, kind: input, shape index: {}]
  %s15 = inlined_call_operand.vmem [shape: f32[8,10], index: 15, kind: input, shape index: {}]
  %s16 = inlined_call_operand.vmem [shape: f32[1,10], index: 16, kind: input, shape index: {}]
  %s17 = inlined_call_operand.hbm [shape: f32[2,10], index: 17, kind: output, shape index: {}]
  %s18 = sld [smem:[#allocation0]]
  $region78: #{tpu_custom_call.1} parent=0
    _
  %s20 = ssub.s32 1, %s18
  %s21 = scalar_select 0, %s20, %s18
  $region1: #{tpu_custom_call.1} parent=0
    #allocation2 [shape = 'u8[1024]{0}', space=vmem, size = 0x400, scoped, tag = 'output window, operand 0, single buffered']
    #allocation3 [shape = 's32[1]{0}', space=sflag, size = 0x4, scoped, tag = 'scoped memory for tpu_custom_call.1']
    %22 = vsyncpa [#allocation3], 0
    // Predicated region
    $region2: #{tpu_custom_call.1} parent=1 // pred_check
      _
    $region3: #{tpu_custom_call.1} parent=1 // pred_check_branch
      %24 = sbr.rel (0) target = $region5
    $region4: #{tpu_custom_call.1} parent=1 // pred_region
      _
    $region5: #{tpu_custom_call.1} parent=1 // pred_fallthru
      _
    // Predicated region
    $region6: #{tpu_custom_call.1} parent=1 // pred_check
      _
    $region7: #{tpu_custom_call.1} parent=1 // pred_check_branch
      %26 = sbr.rel (0) target = $region9
    $region8: #{tpu_custom_call.1} parent=1 // pred_region
      _
    $region9: #{tpu_custom_call.1} parent=1 // pred_fallthru
      _
    // Predicated region
    $region10: #{tpu_custom_call.1} parent=1 // pred_check
      _
    $region11: #{tpu_custom_call.1} parent=1 // pred_check_branch
      %28 = sbr.rel (0) target = $region13
    $region12: #{tpu_custom_call.1} parent=1 // pred_region
      _
    $region13: #{tpu_custom_call.1} parent=1 // pred_fallthru
      _
    // Predicated region
    $region14: #{tpu_custom_call.1} parent=1 // pred_check
      _
    $region15: #{tpu_custom_call.1} parent=1 // pred_check_branch
      %30 = sbr.rel (0) target = $region17
    $region16: #{tpu_custom_call.1} parent=1 // pred_region
      _
    $region17: #{tpu_custom_call.1} parent=1 // pred_fallthru
      _
    // Predicated region
    $region18: #{tpu_custom_call.1} parent=1 // pred_check
      _
    $region19: #{tpu_custom_call.1} parent=1 // pred_check_branch
      %32 = sbr.rel (0) target = $region21
    $region20: #{tpu_custom_call.1} parent=1 // pred_region
      _
    $region21: #{tpu_custom_call.1} parent=1 // pred_fallthru
      _
    // Predicated region
    $region22: #{tpu_custom_call.1} parent=1 // pred_check
      _
    $region23: #{tpu_custom_call.1} parent=1 // pred_check_branch
      %34 = sbr.rel (0) target = $region25
    $region24: #{tpu_custom_call.1} parent=1 // pred_region
      _
    $region25: #{tpu_custom_call.1} parent=1 // pred_fallthru
      _
    // Predicated region
    $region26: #{tpu_custom_call.1} parent=1 // pred_check
      _
    $region27: #{tpu_custom_call.1} parent=1 // pred_check_branch
      %36 = sbr.rel (0) target = $region29
    $region28: #{tpu_custom_call.1} parent=1 // pred_region
      _
    $region29: #{tpu_custom_call.1} parent=1 // pred_fallthru
      _
    // Predicated region
    $region30: #{tpu_custom_call.1} parent=1 // pred_check
      _
    $region31: #{tpu_custom_call.1} parent=1 // pred_check_branch
      %38 = sbr.rel (0) target = $region33
    $region32: #{tpu_custom_call.1} parent=1 // pred_region
      _
    $region33: #{tpu_custom_call.1} parent=1 // pred_fallthru
      _
    // Predicated region
    $region34: #{tpu_custom_call.1} parent=1 // pred_check
      _
    $region35: #{tpu_custom_call.1} parent=1 // pred_check_branch
      %40 = sbr.rel (0) target = $region37
    $region36: #{tpu_custom_call.1} parent=1 // pred_region
      _
    $region37: #{tpu_custom_call.1} parent=1 // pred_fallthru
      _
    // Predicated region
    $region38: #{tpu_custom_call.1} parent=1 // pred_check
      _
    $region39: #{tpu_custom_call.1} parent=1 // pred_check_branch
      %42 = sbr.rel (0) target = $region41
    $region40: #{tpu_custom_call.1} parent=1 // pred_region
      _
    $region41: #{tpu_custom_call.1} parent=1 // pred_fallthru
      _
    // Predicated region
    $region42: #{tpu_custom_call.1} parent=1 // pred_check
      _
    $region43: #{tpu_custom_call.1} parent=1 // pred_check_branch
      %44 = sbr.rel (0) target = $region45
    $region44: #{tpu_custom_call.1} parent=1 // pred_region
      _
    $region45: #{tpu_custom_call.1} parent=1 // pred_fallthru
      _
    // Predicated region
    $region46: #{tpu_custom_call.1} parent=1 // pred_check
      _
    $region47: #{tpu_custom_call.1} parent=1 // pred_check_branch
      %46 = sbr.rel (0) target = $region49
    $region48: #{tpu_custom_call.1} parent=1 // pred_region
      _
    $region49: #{tpu_custom_call.1} parent=1 // pred_fallthru
      _
    // Predicated region
    $region50: #{tpu_custom_call.1} parent=1 // pred_check
      _
    $region51: #{tpu_custom_call.1} parent=1 // pred_check_branch
      %48 = sbr.rel (0) target = $region53
    $region52: #{tpu_custom_call.1} parent=1 // pred_region
      _
    $region53: #{tpu_custom_call.1} parent=1 // pred_fallthru
      _
    // Predicated region
    $region54: #{tpu_custom_call.1} parent=1 // pred_check
      _
    $region55: #{tpu_custom_call.1} parent=1 // pred_check_branch
      %50 = sbr.rel (0) target = $region57
    $region56: #{tpu_custom_call.1} parent=1 // pred_region
      _
    $region57: #{tpu_custom_call.1} parent=1 // pred_fallthru
      _
    // Predicated region
    $region58: #{tpu_custom_call.1} parent=1 // pred_check
      _
    $region59: #{tpu_custom_call.1} parent=1 // pred_check_branch
      %52 = sbr.rel (0) target = $region61
    $region60: #{tpu_custom_call.1} parent=1 // pred_region
      _
    $region61: #{tpu_custom_call.1} parent=1 // pred_fallthru
      _
    // Predicated region
    $region62: #{tpu_custom_call.1} parent=1 // pred_check
      _
    $region63: #{tpu_custom_call.1} parent=1 // pred_check_branch
      %54 = sbr.rel (0) target = $region65
    $region64: #{tpu_custom_call.1} parent=1 // pred_region
      _
    $region65: #{tpu_custom_call.1} parent=1 // pred_fallthru
      _
    // Predicated region
    $region66: #{tpu_custom_call.1} parent=1 // pred_check
      _
    $region67: #{tpu_custom_call.1} parent=1 // pred_check_branch
      %56 = sbr.rel (0) target = $region69
    $region68: #{tpu_custom_call.1} parent=1 // pred_region
      _
    $region69: #{tpu_custom_call.1} parent=1 // pred_fallthru
      _
    %v57 = vld [vmem:[%s0] sm:$0xff]
    %v58 = vld [vmem:[%s0 + $0x8] sm:$0xff]
    %v59 = vld [vmem:[%s0 + $0x10] sm:$0xff]
    %v60 = vld [vmem:[%s0 + $0x18] sm:$0xff]
    %v61 = vld [vmem:[%s1] sm:$0xff]
    %v62 = vld [vmem:[%s1 + $0x8] sm:$0xf]
    %v63 = vld [vmem:[%s2] sm:$0x1]
    %vm68 = vcmask 1041408
    %v69 = vrot.slane %v57, 6
    %v70 = vrot.slane %v58, 6
    %v71 = vsel %vm68, %v69, %v70
    %v72 = vrot.slane %v59, 6
    %v73 = vrot.slane %v60, 6
    %v74 = vsel %vm68, %v72, %v73
    %v79 = vsel %vm68, 0.0, %v69
    %v80 = vsel %vm68, 0.0, %v72
    %vm81 = vcmask 1040384
    %v82 = vrot.slane %v57, 7
    %v83 = vrot.slane %v58, 7
    %v84 = vsel %vm81, %v82, %v83
    %v85 = vrot.slane %v59, 7
    %v86 = vrot.slane %v60, 7
    %v87 = vsel %vm81, %v85, %v86
    %v90 = vsel %vm81, 0.0, %v82
    %v91 = vsel %vm81, 0.0, %v85
    %94 = vrot.lane.b32.xlu0 %v90, 4
    %v95 = vpop.permute.xlu0 %94
    %96 = vrot.lane.b32.xlu0 %v84, 4
    %v97 = vpop.permute.xlu0 %96
    %98 = vrot.lane.b32.xlu0 %v91, 4
    %v99 = vpop.permute.xlu0 %98
    %100 = vrot.lane.b32.xlu0 %v87, 4
    %v101 = vpop.permute.xlu0 %100
    %106 = vrot.lane.b32.xlu0 %v57, 8
    %v107 = vpop.permute.xlu0 %106
    %108 = vrot.lane.b32.xlu0 %v58, 8
    %v109 = vpop.permute.xlu0 %108
    %110 = vrot.lane.b32.xlu0 %v59, 8
    %v111 = vpop.permute.xlu0 %110
    %112 = vrot.lane.b32.xlu0 %v60, 8
    %v113 = vpop.permute.xlu0 %112
    %vm118 = vcmask 31744
    %v119 = vsel %vm118, %v79, %v95
    %v120 = vsel %vm118, %v71, %v97
    %v121 = vsel %vm118, %v80, %v99
    %v122 = vsel %vm118, %v74, %v101
    %vm123 = vcmask 64512
    %v124 = vsel %vm123, %v119, %v107
    %v125 = vsel %vm123, %v120, %v109
    %v126 = vsel %vm123, %v121, %v111
    %v127 = vsel %vm123, %v122, %v113
    %v129 = vlaneseq
    %v130 = vshrl.u32 %v129, 7
    %v131 = vsub.s32 0, %v130
    %v132 = vrot.slane %v63, %v131
    %vm134 = vcmask 97280
    %v136 = vsel %vm134, %v124, 0
    %v139 = vsel %vm134, %v125, 0
    %v142 = vsel %vm134, %v126, 0
    %v145 = vsel %vm134, %v127, 0
    %vm147 = vcmask 1043456
    %v149 = vsel %vm147, %v62, 0
    %151 = vmatprep.subr.mxu0 0.0
    %152 = vmatpush1.msra.mxu0 %v61
    %153 = vmatprep.subr.mxu0 0.0
    %154 = vmatpush1.msra.mxu0 %v149
    %155 = vmatprep.subr.mxu0 0.0
    %156 = vmatpush1.msra.mxu0 0.0
    %157 = vmatprep.subr.mxu0 0.0
    %158 = vmatpush1.msra.mxu0 0.0
    %159 = vmatprep.subr.mxu0 0.0
    %160 = vmatpush1.msra.mxu0 0.0
    %161 = vmatprep.subr.mxu0 0.0
    %162 = vmatpush1.msra.mxu0 0.0
    %163 = vmatprep.subr.mxu0 0.0
    %164 = vmatpush1.msra.mxu0 0.0
    %165 = vmatprep.subr.mxu0 0.0
    %166 = vmatpush1.msra.mxu0 0.0
    %167 = vmatprep.subr.mxu0 0.0
    %168 = vmatpush1.msra.mxu0 0.0
    %169 = vmatprep.subr.mxu0 0.0
    %170 = vmatpush1.msra.mxu0 0.0
    %171 = vmatprep.subr.mxu0 0.0
    %172 = vmatpush1.msra.mxu0 0.0
    %173 = vmatprep.subr.mxu0 0.0
    %174 = vmatpush1.msra.mxu0 0.0
    %175 = vmatprep.subr.mxu0 0.0
    %176 = vmatpush1.msra.mxu0 0.0
    %177 = vmatprep.subr.mxu0 0.0
    %178 = vmatpush1.msra.mxu0 0.0
    %179 = vmatprep.subr.mxu0 0.0
    %180 = vmatpush1.msra.mxu0 0.0
    %181 = vmatprep.subr.mxu0 0.0
    %182 = vmatpush1.msra.mxu0 0.0
    %183 = vmatprep.subr.mxu0 0.0
    %184 = vmatpush1.msra.mxu0 0.0
    %185 = vmatprep.subr.mxu0 0.0
    %186 = vmatpush1.msra.mxu0 0.0
    %187 = vmatprep.subr.mxu0 0.0
    %188 = vmatpush1.msra.mxu0 0.0
    %189 = vmatprep.subr.mxu0 0.0
    %190 = vmatpush1.msra.mxu0 0.0
    %191 = vmatprep.subr.mxu0 0.0
    %192 = vmatpush1.msra.mxu0 0.0
    %193 = vmatprep.subr.mxu0 0.0
    %194 = vmatpush1.msra.mxu0 0.0
    %195 = vmatprep.subr.mxu0 0.0
    %196 = vmatpush1.msra.mxu0 0.0
    %197 = vmatprep.subr.mxu0 0.0
    %198 = vmatpush1.msra.mxu0 0.0
    %199 = vmatprep.subr.mxu0 0.0
    %200 = vmatpush1.msra.mxu0 0.0
    %201 = vmatprep.subr.mxu0 0.0
    %202 = vmatpush1.msra.mxu0 0.0
    %203 = vmatprep.subr.mxu0 0.0
    %204 = vmatpush1.msra.mxu0 0.0
    %205 = vmatprep.subr.mxu0 0.0
    %206 = vmatpush1.msra.mxu0 0.0
    %207 = vmatprep.subr.mxu0 0.0
    %208 = vmatpush1.msra.mxu0 0.0
    %209 = vmatprep.subr.mxu0 0.0
    %210 = vmatpush1.msra.mxu0 0.0
    %211 = vmatprep.subr.mxu0 0.0
    %212 = vmatpush1.msra.mxu0 0.0
    %213 = vmatprep.subr.mxu0 0.0
    %214 = vmatpush1.msra.mxu0 0.0
    %215 = vmatprep.mubr.f32.mxu0 0.0
    %216 = vmatmul.mubr.f32.gmra.mrb[0].mxu0 %v136
    %v217 = vpop.f32.mrb[0].mxu0
    %v218 = vadd.f32 %v132, %v217
    %v219 = vpop.f32.mrb[0].mxu0
    %220 = vmatprep.mubr.f32.mxu0 0.0
    %221 = vmatmul.mubr.f32.gmra.mrb[0].mxu0 %v139
    %v222 = vpop.f32.mrb[0].mxu0
    %v223 = vadd.f32 %v132, %v222
    %v224 = vpop.f32.mrb[0].mxu0
    %225 = vmatprep.mubr.f32.mxu0 0.0
    %226 = vmatmul.mubr.f32.gmra.mrb[0].mxu0 %v142
    %v227 = vpop.f32.mrb[0].mxu0
    %v228 = vadd.f32 %v132, %v227
    %v229 = vpop.f32.mrb[0].mxu0
    %230 = vmatprep.mubr.f32.mxu0 0.0
    %231 = vmatmul.mubr.f32.gmra.mrb[0].mxu0 %v145
    %v232 = vpop.f32.mrb[0].mxu0
    %v233 = vadd.f32 %v132, %v232
    %v234 = vpop.f32.mrb[0].mxu0
    %235 = vdwg.mxu0
    %v236 = vmax.f32 %v218, 0.0
    %v237 = vmax.f32 %v223, 0.0
    %v238 = vmax.f32 %v228, 0.0
    %v239 = vmax.f32 %v233, 0.0
    %v240 = vld [vmem:[%s3] sm:$0xff]
    %v241 = vld [vmem:[%s3 + $0x8] sm:$0xff]
    %v242 = vld [vmem:[%s3 + $0x10] sm:$0xff]
    %v243 = vld [vmem:[%s4] sm:$0x1]
    %v248 = vrot.slane %v236, 6
    %v249 = vrot.slane %v237, 6
    %v250 = vsel %vm68, %v248, %v249
    %v251 = vrot.slane %v238, 6
    %v252 = vrot.slane %v239, 6
    %v253 = vsel %vm68, %v251, %v252
    %v258 = vsel %vm68, 0.0, %v248
    %v259 = vsel %vm68, 0.0, %v251
    %v260 = vrot.slane %v236, 7
    %v261 = vrot.slane %v237, 7
    %v262 = vsel %vm81, %v260, %v261
    %v263 = vrot.slane %v238, 7
    %v264 = vrot.slane %v239, 7
    %v265 = vsel %vm81, %v263, %v264
    %v268 = vsel %vm81, 0.0, %v260
    %v269 = vsel %vm81, 0.0, %v263
    %272 = vrot.lane.b32.xlu0 %v268, 8
    %v273 = vpop.permute.xlu0 %272
    %274 = vrot.lane.b32.xlu0 %v262, 8
    %v275 = vpop.permute.xlu0 %274
    %276 = vrot.lane.b32.xlu0 %v269, 8
    %v277 = vpop.permute.xlu0 %276
    %278 = vrot.lane.b32.xlu0 %v265, 8
    %v279 = vpop.permute.xlu0 %278
    %284 = vrot.lane.b32.xlu0 %v236, 16
    %v285 = vpop.permute.xlu0 %284
    %286 = vrot.lane.b32.xlu0 %v237, 16
    %v287 = vpop.permute.xlu0 %286
    %288 = vrot.lane.b32.xlu0 %v238, 16
    %v289 = vpop.permute.xlu0 %288
    %290 = vrot.lane.b32.xlu0 %v239, 16
    %v291 = vpop.permute.xlu0 %290
    %v296 = vsel %vm123, %v258, %v273
    %v297 = vsel %vm123, %v250, %v275
    %v298 = vsel %vm123, %v259, %v277
    %v299 = vsel %vm123, %v253, %v279
    %vm300 = vcmask 130048
    %v301 = vsel %vm300, %v296, %v285
    %v302 = vsel %vm300, %v297, %v287
    %v303 = vsel %vm300, %v298, %v289
    %v304 = vsel %vm300, %v299, %v291
    %v306 = vlaneseq
    %v307 = vshrl.u32 %v306, 7
    %v308 = vsub.s32 0, %v307
    %v309 = vrot.slane %v243, %v308
    %vm311 = vcmask 195584
    %v313 = vsel %vm311, %v301, 0
    %v316 = vsel %vm311, %v302, 0
    %v319 = vsel %vm311, %v303, 0
    %v322 = vsel %vm311, %v304, 0
    %324 = vmatprep.subr.mxu0 0.0
    %325 = vmatpush1.msra.mxu0 %v240
    %326 = vmatprep.subr.mxu0 0.0
    %327 = vmatpush1.msra.mxu0 %v241
    %328 = vmatprep.subr.mxu0 0.0
    %329 = vmatpush1.msra.mxu0 %v242
    %330 = vmatprep.subr.mxu0 0.0
    %331 = vmatpush1.msra.mxu0 0.0
    %332 = vmatprep.subr.mxu0 0.0
    %333 = vmatpush1.msra.mxu0 0.0
    %334 = vmatprep.subr.mxu0 0.0
    %335 = vmatpush1.msra.mxu0 0.0
    %336 = vmatprep.subr.mxu0 0.0
    %337 = vmatpush1.msra.mxu0 0.0
    %338 = vmatprep.subr.mxu0 0.0
    %339 = vmatpush1.msra.mxu0 0.0
    %340 = vmatprep.subr.mxu0 0.0
    %341 = vmatpush1.msra.mxu0 0.0
    %342 = vmatprep.subr.mxu0 0.0
    %343 = vmatpush1.msra.mxu0 0.0
    %344 = vmatprep.subr.mxu0 0.0
    %345 = vmatpush1.msra.mxu0 0.0
    %346 = vmatprep.subr.mxu0 0.0
    %347 = vmatpush1.msra.mxu0 0.0
    %348 = vmatprep.subr.mxu0 0.0
    %349 = vmatpush1.msra.mxu0 0.0
    %350 = vmatprep.subr.mxu0 0.0
    %351 = vmatpush1.msra.mxu0 0.0
    %352 = vmatprep.subr.mxu0 0.0
    %353 = vmatpush1.msra.mxu0 0.0
    %354 = vmatprep.subr.mxu0 0.0
    %355 = vmatpush1.msra.mxu0 0.0
    %356 = vmatprep.subr.mxu0 0.0
    %357 = vmatpush1.msra.mxu0 0.0
    %358 = vmatprep.subr.mxu0 0.0
    %359 = vmatpush1.msra.mxu0 0.0
    %360 = vmatprep.subr.mxu0 0.0
    %361 = vmatpush1.msra.mxu0 0.0
    %362 = vmatprep.subr.mxu0 0.0
    %363 = vmatpush1.msra.mxu0 0.0
    %364 = vmatprep.subr.mxu0 0.0
    %365 = vmatpush1.msra.mxu0 0.0
    %366 = vmatprep.subr.mxu0 0.0
    %367 = vmatpush1.msra.mxu0 0.0
    %368 = vmatprep.subr.mxu0 0.0
    %369 = vmatpush1.msra.mxu0 0.0
    %370 = vmatprep.subr.mxu0 0.0
    %371 = vmatpush1.msra.mxu0 0.0
    %372 = vmatprep.subr.mxu0 0.0
    %373 = vmatpush1.msra.mxu0 0.0
    %374 = vmatprep.subr.mxu0 0.0
    %375 = vmatpush1.msra.mxu0 0.0
    %376 = vmatprep.subr.mxu0 0.0
    %377 = vmatpush1.msra.mxu0 0.0
    %378 = vmatprep.subr.mxu0 0.0
    %379 = vmatpush1.msra.mxu0 0.0
    %380 = vmatprep.subr.mxu0 0.0
    %381 = vmatpush1.msra.mxu0 0.0
    %382 = vmatprep.subr.mxu0 0.0
    %383 = vmatpush1.msra.mxu0 0.0
    %384 = vmatprep.subr.mxu0 0.0
    %385 = vmatpush1.msra.mxu0 0.0
    %386 = vmatprep.subr.mxu0 0.0
    %387 = vmatpush1.msra.mxu0 0.0
    %388 = vmatprep.mubr.f32.mxu0 0.0
    %389 = vmatmul.mubr.f32.gmra.mrb[0].mxu0 %v313
    %v390 = vpop.f32.mrb[0].mxu0
    %v391 = vadd.f32 %v309, %v390
    %v392 = vpop.f32.mrb[0].mxu0
    %393 = vmatprep.mubr.f32.mxu0 0.0
    %394 = vmatmul.mubr.f32.gmra.mrb[0].mxu0 %v316
    %v395 = vpop.f32.mrb[0].mxu0
    %v396 = vadd.f32 %v309, %v395
    %v397 = vpop.f32.mrb[0].mxu0
    %398 = vmatprep.mubr.f32.mxu0 0.0
    %399 = vmatmul.mubr.f32.gmra.mrb[0].mxu0 %v319
    %v400 = vpop.f32.mrb[0].mxu0
    %v401 = vadd.f32 %v309, %v400
    %v402 = vpop.f32.mrb[0].mxu0
    %403 = vmatprep.mubr.f32.mxu0 0.0
    %404 = vmatmul.mubr.f32.gmra.mrb[0].mxu0 %v322
    %v405 = vpop.f32.mrb[0].mxu0
    %v406 = vadd.f32 %v309, %v405
    %v407 = vpop.f32.mrb[0].mxu0
    %408 = vdwg.mxu0
    %v409 = vmax.f32 %v391, 0.0
    %v410 = vmax.f32 %v396, 0.0
    %v411 = vmax.f32 %v401, 0.0
    %v412 = vmax.f32 %v406, 0.0
    %v413 = vld [vmem:[%s5] sm:$0xf]
    %v414 = vld [vmem:[%s6] sm:$0x1]
    %v416 = vlaneseq
    %v417 = vshrl.u32 %v416, 7
    %v418 = vsub.s32 0, %v417
    %v419 = vrot.slane %v414, %v418
    %v421 = vsel %vm118, %v57, 0
    %v423 = vsel %vm118, %v58, 0
    %v425 = vsel %vm118, %v59, 0
    %v427 = vsel %vm118, %v60, 0
    %v430 = vsel %vm147, %v413, 0
    %432 = vmatprep.subr.mxu0 0.0
    %433 = vmatpush1.msra.mxu0 %v430
    %434 = vmatprep.subr.mxu0 0.0
    %435 = vmatpush1.msra.mxu0 0.0
    %436 = vmatprep.subr.mxu0 0.0
    %437 = vmatpush1.msra.mxu0 0.0
    %438 = vmatprep.subr.mxu0 0.0
    %439 = vmatpush1.msra.mxu0 0.0
    %440 = vmatprep.subr.mxu0 0.0
    %441 = vmatpush1.msra.mxu0 0.0
    %442 = vmatprep.subr.mxu0 0.0
    %443 = vmatpush1.msra.mxu0 0.0
    %444 = vmatprep.subr.mxu0 0.0
    %445 = vmatpush1.msra.mxu0 0.0
    %446 = vmatprep.subr.mxu0 0.0
    %447 = vmatpush1.msra.mxu0 0.0
    %448 = vmatprep.subr.mxu0 0.0
    %449 = vmatpush1.msra.mxu0 0.0
    %450 = vmatprep.subr.mxu0 0.0
    %451 = vmatpush1.msra.mxu0 0.0
    %452 = vmatprep.subr.mxu0 0.0
    %453 = vmatpush1.msra.mxu0 0.0
    %454 = vmatprep.subr.mxu0 0.0
    %455 = vmatpush1.msra.mxu0 0.0
    %456 = vmatprep.subr.mxu0 0.0
    %457 = vmatpush1.msra.mxu0 0.0
    %458 = vmatprep.subr.mxu0 0.0
    %459 = vmatpush1.msra.mxu0 0.0
    %460 = vmatprep.subr.mxu0 0.0
    %461 = vmatpush1.msra.mxu0 0.0
    %462 = vmatprep.subr.mxu0 0.0
    %463 = vmatpush1.msra.mxu0 0.0
    %464 = vmatprep.subr.mxu0 0.0
    %465 = vmatpush1.msra.mxu0 0.0
    %466 = vmatprep.subr.mxu0 0.0
    %467 = vmatpush1.msra.mxu0 0.0
    %468 = vmatprep.subr.mxu0 0.0
    %469 = vmatpush1.msra.mxu0 0.0
    %470 = vmatprep.subr.mxu0 0.0
    %471 = vmatpush1.msra.mxu0 0.0
    %472 = vmatprep.subr.mxu0 0.0
    %473 = vmatpush1.msra.mxu0 0.0
    %474 = vmatprep.subr.mxu0 0.0
    %475 = vmatpush1.msra.mxu0 0.0
    %476 = vmatprep.subr.mxu0 0.0
    %477 = vmatpush1.msra.mxu0 0.0
    %478 = vmatprep.subr.mxu0 0.0
    %479 = vmatpush1.msra.mxu0 0.0
    %480 = vmatprep.subr.mxu0 0.0
    %481 = vmatpush1.msra.mxu0 0.0
    %482 = vmatprep.subr.mxu0 0.0
    %483 = vmatpush1.msra.mxu0 0.0
    %484 = vmatprep.subr.mxu0 0.0
    %485 = vmatpush1.msra.mxu0 0.0
    %486 = vmatprep.subr.mxu0 0.0
    %487 = vmatpush1.msra.mxu0 0.0
    %488 = vmatprep.subr.mxu0 0.0
    %489 = vmatpush1.msra.mxu0 0.0
    %490 = vmatprep.subr.mxu0 0.0
    %491 = vmatpush1.msra.mxu0 0.0
    %492 = vmatprep.subr.mxu0 0.0
    %493 = vmatpush1.msra.mxu0 0.0
    %494 = vmatprep.subr.mxu0 0.0
    %495 = vmatpush1.msra.mxu0 0.0
    %496 = vmatprep.mubr.f32.mxu0 0.0
    %497 = vmatmul.mubr.f32.gmra.mrb[0].mxu0 %v421
    %v498 = vpop.f32.mrb[0].mxu0
    %v499 = vadd.f32 %v419, %v498
    %v500 = vpop.f32.mrb[0].mxu0
    %501 = vmatprep.mubr.f32.mxu0 0.0
    %502 = vmatmul.mubr.f32.gmra.mrb[0].mxu0 %v423
    %v503 = vpop.f32.mrb[0].mxu0
    %v504 = vadd.f32 %v419, %v503
    %v505 = vpop.f32.mrb[0].mxu0
    %506 = vmatprep.mubr.f32.mxu0 0.0
    %507 = vmatmul.mubr.f32.gmra.mrb[0].mxu0 %v425
    %v508 = vpop.f32.mrb[0].mxu0
    %v509 = vadd.f32 %v419, %v508
    %v510 = vpop.f32.mrb[0].mxu0
    %511 = vmatprep.mubr.f32.mxu0 0.0
    %512 = vmatmul.mubr.f32.gmra.mrb[0].mxu0 %v427
    %v513 = vpop.f32.mrb[0].mxu0
    %v514 = vadd.f32 %v419, %v513
    %v515 = vpop.f32.mrb[0].mxu0
    %516 = vdwg.mxu0
    %v517 = vadd.f32 %v409, %v499
    %v518 = vadd.f32 %v410, %v504
    %v519 = vadd.f32 %v411, %v509
    %v520 = vadd.f32 %v412, %v514
    %v521 = vmax.f32 %v517, 0.0
    %v522 = vmax.f32 %v518, 0.0
    %v523 = vmax.f32 %v519, 0.0
    %v524 = vmax.f32 %v520, 0.0
    %v525 = vld [vmem:[%s7] sm:$0xff]
    %v526 = vld [vmem:[%s7 + $0x8] sm:$0xff]
    %v527 = vld [vmem:[%s7 + $0x10] sm:$0xff]
    %v528 = vld [vmem:[%s8] sm:$0x1]
    %v533 = vrot.slane %v521, 4
    %v534 = vrot.slane %v522, 4
    %v535 = vsel %vm147, %v533, %v534
    %v536 = vrot.slane %v523, 4
    %v537 = vrot.slane %v524, 4
    %v538 = vsel %vm147, %v536, %v537
    %v543 = vsel %vm147, 0.0, %v533
    %v544 = vsel %vm147, 0.0, %v536
    %v545 = vrot.slane %v521, 6
    %v546 = vrot.slane %v522, 6
    %v547 = vsel %vm68, %v545, %v546
    %v548 = vrot.slane %v523, 6
    %v549 = vrot.slane %v524, 6
    %v550 = vsel %vm68, %v548, %v549
    %v553 = vsel %vm68, 0.0, %v545
    %v554 = vsel %vm68, 0.0, %v548
    %557 = vrot.lane.b32.xlu0 %v553, 8
    %v558 = vpop.permute.xlu0 %557
    %559 = vrot.lane.b32.xlu0 %v547, 8
    %v560 = vpop.permute.xlu0 %559
    %561 = vrot.lane.b32.xlu0 %v554, 8
    %v562 = vpop.permute.xlu0 %561
    %563 = vrot.lane.b32.xlu0 %v550, 8
    %v564 = vpop.permute.xlu0 %563
    %569 = vrot.lane.b32.xlu0 %v521, 16
    %v570 = vpop.permute.xlu0 %569
    %571 = vrot.lane.b32.xlu0 %v522, 16
    %v572 = vpop.permute.xlu0 %571
    %573 = vrot.lane.b32.xlu0 %v523, 16
    %v574 = vpop.permute.xlu0 %573
    %575 = vrot.lane.b32.xlu0 %v524, 16
    %v576 = vpop.permute.xlu0 %575
    %v581 = vsel %vm123, %v543, %v558
    %v582 = vsel %vm123, %v535, %v560
    %v583 = vsel %vm123, %v544, %v562
    %v584 = vsel %vm123, %v538, %v564
    %v585 = vsel %vm300, %v581, %v570
    %v586 = vsel %vm300, %v582, %v572
    %v587 = vsel %vm300, %v583, %v574
    %v588 = vsel %vm300, %v584, %v576
    %v590 = vlaneseq
    %v591 = vshrl.u32 %v590, 7
    %v592 = vsub.s32 0, %v591
    %v593 = vrot.slane %v528, %v592
    %v596 = vsel %vm311, %v585, 0
    %v599 = vsel %vm311, %v586, 0
    %v602 = vsel %vm311, %v587, 0
    %v605 = vsel %vm311, %v588, 0
    %607 = vmatprep.subr.mxu0 0.0
    %608 = vmatpush1.msra.mxu0 %v525
    %609 = vmatprep.subr.mxu0 0.0
    %610 = vmatpush1.msra.mxu0 %v526
    %611 = vmatprep.subr.mxu0 0.0
    %612 = vmatpush1.msra.mxu0 %v527
    %613 = vmatprep.subr.mxu0 0.0
    %614 = vmatpush1.msra.mxu0 0.0
    %615 = vmatprep.subr.mxu0 0.0
    %616 = vmatpush1.msra.mxu0 0.0
    %617 = vmatprep.subr.mxu0 0.0
    %618 = vmatpush1.msra.mxu0 0.0
    %619 = vmatprep.subr.mxu0 0.0
    %620 = vmatpush1.msra.mxu0 0.0
    %621 = vmatprep.subr.mxu0 0.0
    %622 = vmatpush1.msra.mxu0 0.0
    %623 = vmatprep.subr.mxu0 0.0
    %624 = vmatpush1.msra.mxu0 0.0
    %625 = vmatprep.subr.mxu0 0.0
    %626 = vmatpush1.msra.mxu0 0.0
    %627 = vmatprep.subr.mxu0 0.0
    %628 = vmatpush1.msra.mxu0 0.0
    %629 = vmatprep.subr.mxu0 0.0
    %630 = vmatpush1.msra.mxu0 0.0
    %631 = vmatprep.subr.mxu0 0.0
    %632 = vmatpush1.msra.mxu0 0.0
    %633 = vmatprep.subr.mxu0 0.0
    %634 = vmatpush1.msra.mxu0 0.0
    %635 = vmatprep.subr.mxu0 0.0
    %636 = vmatpush1.msra.mxu0 0.0
    %637 = vmatprep.subr.mxu0 0.0
    %638 = vmatpush1.msra.mxu0 0.0
    %639 = vmatprep.subr.mxu0 0.0
    %640 = vmatpush1.msra.mxu0 0.0
    %641 = vmatprep.subr.mxu0 0.0
    %642 = vmatpush1.msra.mxu0 0.0
    %643 = vmatprep.subr.mxu0 0.0
    %644 = vmatpush1.msra.mxu0 0.0
    %645 = vmatprep.subr.mxu0 0.0
    %646 = vmatpush1.msra.mxu0 0.0
    %647 = vmatprep.subr.mxu0 0.0
    %648 = vmatpush1.msra.mxu0 0.0
    %649 = vmatprep.subr.mxu0 0.0
    %650 = vmatpush1.msra.mxu0 0.0
    %651 = vmatprep.subr.mxu0 0.0
    %652 = vmatpush1.msra.mxu0 0.0
    %653 = vmatprep.subr.mxu0 0.0
    %654 = vmatpush1.msra.mxu0 0.0
    %655 = vmatprep.subr.mxu0 0.0
    %656 = vmatpush1.msra.mxu0 0.0
    %657 = vmatprep.subr.mxu0 0.0
    %658 = vmatpush1.msra.mxu0 0.0
    %659 = vmatprep.subr.mxu0 0.0
    %660 = vmatpush1.msra.mxu0 0.0
    %661 = vmatprep.subr.mxu0 0.0
    %662 = vmatpush1.msra.mxu0 0.0
    %663 = vmatprep.subr.mxu0 0.0
    %664 = vmatpush1.msra.mxu0 0.0
    %665 = vmatprep.subr.mxu0 0.0
    %666 = vmatpush1.msra.mxu0 0.0
    %667 = vmatprep.subr.mxu0 0.0
    %668 = vmatpush1.msra.mxu0 0.0
    %669 = vmatprep.subr.mxu0 0.0
    %670 = vmatpush1.msra.mxu0 0.0
    %671 = vmatprep.mubr.f32.mxu0 0.0
    %672 = vmatmul.mubr.f32.gmra.mrb[0].mxu0 %v596
    %v673 = vpop.f32.mrb[0].mxu0
    %v674 = vadd.f32 %v593, %v673
    %v675 = vpop.f32.mrb[0].mxu0
    %676 = vmatprep.mubr.f32.mxu0 0.0
    %677 = vmatmul.mubr.f32.gmra.mrb[0].mxu0 %v599
    %v678 = vpop.f32.mrb[0].mxu0
    %v679 = vadd.f32 %v593, %v678
    %v680 = vpop.f32.mrb[0].mxu0
    %681 = vmatprep.mubr.f32.mxu0 0.0
    %682 = vmatmul.mubr.f32.gmra.mrb[0].mxu0 %v602
    %v683 = vpop.f32.mrb[0].mxu0
    %v684 = vadd.f32 %v593, %v683
    %v685 = vpop.f32.mrb[0].mxu0
    %686 = vmatprep.mubr.f32.mxu0 0.0
    %687 = vmatmul.mubr.f32.gmra.mrb[0].mxu0 %v605
    %v688 = vpop.f32.mrb[0].mxu0
    %v689 = vadd.f32 %v593, %v688
    %v690 = vpop.f32.mrb[0].mxu0
    %691 = vdwg.mxu0
    %v692 = vmax.f32 %v674, 0.0
    %v693 = vmax.f32 %v679, 0.0
    %v694 = vmax.f32 %v684, 0.0
    %v695 = vmax.f32 %v689, 0.0
    %v696 = vld [vmem:[%s9] sm:$0xff]
    %v697 = vld [vmem:[%s9 + $0x8] sm:$0xff]
    %v698 = vld [vmem:[%s9 + $0x10] sm:$0xff]
    %v699 = vld [vmem:[%s10] sm:$0x1]
    %v704 = vrot.slane %v692, 4
    %v705 = vrot.slane %v693, 4
    %v706 = vsel %vm147, %v704, %v705
    %v707 = vrot.slane %v694, 4
    %v708 = vrot.slane %v695, 4
    %v709 = vsel %vm147, %v707, %v708
    %v714 = vsel %vm147, 0.0, %v704
    %v715 = vsel %vm147, 0.0, %v707
    %v716 = vrot.slane %v692, 6
    %v717 = vrot.slane %v693, 6
    %v718 = vsel %vm68, %v716, %v717
    %v719 = vrot.slane %v694, 6
    %v720 = vrot.slane %v695, 6
    %v721 = vsel %vm68, %v719, %v720
    %v724 = vsel %vm68, 0.0, %v716
    %v725 = vsel %vm68, 0.0, %v719
    %728 = vrot.lane.b32.xlu0 %v724, 8
    %v729 = vpop.permute.xlu0 %728
    %730 = vrot.lane.b32.xlu0 %v718, 8
    %v731 = vpop.permute.xlu0 %730
    %732 = vrot.lane.b32.xlu0 %v725, 8
    %v733 = vpop.permute.xlu0 %732
    %734 = vrot.lane.b32.xlu0 %v721, 8
    %v735 = vpop.permute.xlu0 %734
    %740 = vrot.lane.b32.xlu0 %v692, 16
    %v741 = vpop.permute.xlu0 %740
    %742 = vrot.lane.b32.xlu0 %v693, 16
    %v743 = vpop.permute.xlu0 %742
    %744 = vrot.lane.b32.xlu0 %v694, 16
    %v745 = vpop.permute.xlu0 %744
    %746 = vrot.lane.b32.xlu0 %v695, 16
    %v747 = vpop.permute.xlu0 %746
    %v752 = vsel %vm123, %v714, %v729
    %v753 = vsel %vm123, %v706, %v731
    %v754 = vsel %vm123, %v715, %v733
    %v755 = vsel %vm123, %v709, %v735
    %v756 = vsel %vm300, %v752, %v741
    %v757 = vsel %vm300, %v753, %v743
    %v758 = vsel %vm300, %v754, %v745
    %v759 = vsel %vm300, %v755, %v747
    %v761 = vlaneseq
    %v762 = vshrl.u32 %v761, 7
    %v763 = vsub.s32 0, %v762
    %v764 = vrot.slane %v699, %v763
    %v767 = vsel %vm311, %v756, 0
    %v770 = vsel %vm311, %v757, 0
    %v773 = vsel %vm311, %v758, 0
    %v776 = vsel %vm311, %v759, 0
    %778 = vmatprep.subr.mxu0 0.0
    %779 = vmatpush1.msra.mxu0 %v696
    %780 = vmatprep.subr.mxu0 0.0
    %781 = vmatpush1.msra.mxu0 %v697
    %782 = vmatprep.subr.mxu0 0.0
    %783 = vmatpush1.msra.mxu0 %v698
    %784 = vmatprep.subr.mxu0 0.0
    %785 = vmatpush1.msra.mxu0 0.0
    %786 = vmatprep.subr.mxu0 0.0
    %787 = vmatpush1.msra.mxu0 0.0
    %788 = vmatprep.subr.mxu0 0.0
    %789 = vmatpush1.msra.mxu0 0.0
    %790 = vmatprep.subr.mxu0 0.0
    %791 = vmatpush1.msra.mxu0 0.0
    %792 = vmatprep.subr.mxu0 0.0
    %793 = vmatpush1.msra.mxu0 0.0
    %794 = vmatprep.subr.mxu0 0.0
    %795 = vmatpush1.msra.mxu0 0.0
    %796 = vmatprep.subr.mxu0 0.0
    %797 = vmatpush1.msra.mxu0 0.0
    %798 = vmatprep.subr.mxu0 0.0
    %799 = vmatpush1.msra.mxu0 0.0
    %800 = vmatprep.subr.mxu0 0.0
    %801 = vmatpush1.msra.mxu0 0.0
    %802 = vmatprep.subr.mxu0 0.0
    %803 = vmatpush1.msra.mxu0 0.0
    %804 = vmatprep.subr.mxu0 0.0
    %805 = vmatpush1.msra.mxu0 0.0
    %806 = vmatprep.subr.mxu0 0.0
    %807 = vmatpush1.msra.mxu0 0.0
    %808 = vmatprep.subr.mxu0 0.0
    %809 = vmatpush1.msra.mxu0 0.0
    %810 = vmatprep.subr.mxu0 0.0
    %811 = vmatpush1.msra.mxu0 0.0
    %812 = vmatprep.subr.mxu0 0.0
    %813 = vmatpush1.msra.mxu0 0.0
    %814 = vmatprep.subr.mxu0 0.0
    %815 = vmatpush1.msra.mxu0 0.0
    %816 = vmatprep.subr.mxu0 0.0
    %817 = vmatpush1.msra.mxu0 0.0
    %818 = vmatprep.subr.mxu0 0.0
    %819 = vmatpush1.msra.mxu0 0.0
    %820 = vmatprep.subr.mxu0 0.0
    %821 = vmatpush1.msra.mxu0 0.0
    %822 = vmatprep.subr.mxu0 0.0
    %823 = vmatpush1.msra.mxu0 0.0
    %824 = vmatprep.subr.mxu0 0.0
    %825 = vmatpush1.msra.mxu0 0.0
    %826 = vmatprep.subr.mxu0 0.0
    %827 = vmatpush1.msra.mxu0 0.0
    %828 = vmatprep.subr.mxu0 0.0
    %829 = vmatpush1.msra.mxu0 0.0
    %830 = vmatprep.subr.mxu0 0.0
    %831 = vmatpush1.msra.mxu0 0.0
    %832 = vmatprep.subr.mxu0 0.0
    %833 = vmatpush1.msra.mxu0 0.0
    %834 = vmatprep.subr.mxu0 0.0
    %835 = vmatpush1.msra.mxu0 0.0
    %836 = vmatprep.subr.mxu0 0.0
    %837 = vmatpush1.msra.mxu0 0.0
    %838 = vmatprep.subr.mxu0 0.0
    %839 = vmatpush1.msra.mxu0 0.0
    %840 = vmatprep.subr.mxu0 0.0
    %841 = vmatpush1.msra.mxu0 0.0
    %842 = vmatprep.mubr.f32.mxu0 0.0
    %843 = vmatmul.mubr.f32.gmra.mrb[0].mxu0 %v767
    %v844 = vpop.f32.mrb[0].mxu0
    %v845 = vadd.f32 %v764, %v844
    %v846 = vpop.f32.mrb[0].mxu0
    %847 = vmatprep.mubr.f32.mxu0 0.0
    %848 = vmatmul.mubr.f32.gmra.mrb[0].mxu0 %v770
    %v849 = vpop.f32.mrb[0].mxu0
    %v850 = vadd.f32 %v764, %v849
    %v851 = vpop.f32.mrb[0].mxu0
    %852 = vmatprep.mubr.f32.mxu0 0.0
    %853 = vmatmul.mubr.f32.gmra.mrb[0].mxu0 %v773
    %v854 = vpop.f32.mrb[0].mxu0
    %v855 = vadd.f32 %v764, %v854
    %v856 = vpop.f32.mrb[0].mxu0
    %857 = vmatprep.mubr.f32.mxu0 0.0
    %858 = vmatmul.mubr.f32.gmra.mrb[0].mxu0 %v776
    %v859 = vpop.f32.mrb[0].mxu0
    %v860 = vadd.f32 %v764, %v859
    %v861 = vpop.f32.mrb[0].mxu0
    %862 = vdwg.mxu0
    %v863 = vmax.f32 %v845, 0.0
    %v864 = vmax.f32 %v850, 0.0
    %v865 = vmax.f32 %v855, 0.0
    %v866 = vmax.f32 %v860, 0.0
    %v867 = vadd.f32 %v863, %v521
    %v868 = vadd.f32 %v864, %v522
    %v869 = vadd.f32 %v865, %v523
    %v870 = vadd.f32 %v866, %v524
    %v871 = vmax.f32 %v867, 0.0
    %v872 = vmax.f32 %v868, 0.0
    %v873 = vmax.f32 %v869, 0.0
    %v874 = vmax.f32 %v870, 0.0
    %v875 = vld [vmem:[%s11] sm:$0xff]
    %v876 = vld [vmem:[%s11 + $0x8] sm:$0xff]
    %v877 = vld [vmem:[%s11 + $0x10] sm:$0xff]
    %v878 = vld [vmem:[%s12] sm:$0x1]
    %v883 = vrot.slane %v871, 4
    %v884 = vrot.slane %v872, 4
    %v885 = vsel %vm147, %v883, %v884
    %v886 = vrot.slane %v873, 4
    %v887 = vrot.slane %v874, 4
    %v888 = vsel %vm147, %v886, %v887
    %v891 = vsel %vm147, 0.0, %v883
    %v892 = vsel %vm147, 0.0, %v886
    %895 = vrot.lane.b32.xlu0 %v891, 8
    %v896 = vpop.permute.xlu0 %895
    %897 = vrot.lane.b32.xlu0 %v885, 8
    %v898 = vpop.permute.xlu0 %897
    %899 = vrot.lane.b32.xlu0 %v892, 8
    %v900 = vpop.permute.xlu0 %899
    %901 = vrot.lane.b32.xlu0 %v888, 8
    %v902 = vpop.permute.xlu0 %901
    %907 = vrot.lane.b32.xlu0 %v871, 16
    %v908 = vpop.permute.xlu0 %907
    %909 = vrot.lane.b32.xlu0 %v872, 16
    %v910 = vpop.permute.xlu0 %909
    %911 = vrot.lane.b32.xlu0 %v873, 16
    %v912 = vpop.permute.xlu0 %911
    %913 = vrot.lane.b32.xlu0 %v874, 16
    %v914 = vpop.permute.xlu0 %913
    %v919 = vsel %vm123, 0.0, %v896
    %v920 = vsel %vm123, %v871, %v898
    %v921 = vsel %vm123, 0.0, %v900
    %v922 = vsel %vm123, %v873, %v902
    %v923 = vsel %vm300, %v919, %v908
    %v924 = vsel %vm300, %v920, %v910
    %v925 = vsel %vm300, %v921, %v912
    %v926 = vsel %vm300, %v922, %v914
    %v928 = vlaneseq
    %v929 = vshrl.u32 %v928, 7
    %v930 = vsub.s32 0, %v929
    %v931 = vrot.slane %v878, %v930
    %v934 = vsel %vm311, %v923, 0
    %v937 = vsel %vm311, %v924, 0
    %v940 = vsel %vm311, %v925, 0
    %v943 = vsel %vm311, %v926, 0
    %945 = vmatprep.subr.mxu0 0.0
    %946 = vmatpush1.msra.mxu0 %v875
    %947 = vmatprep.subr.mxu0 0.0
    %948 = vmatpush1.msra.mxu0 %v876
    %949 = vmatprep.subr.mxu0 0.0
    %950 = vmatpush1.msra.mxu0 %v877
    %951 = vmatprep.subr.mxu0 0.0
    %952 = vmatpush1.msra.mxu0 0.0
    %953 = vmatprep.subr.mxu0 0.0
    %954 = vmatpush1.msra.mxu0 0.0
    %955 = vmatprep.subr.mxu0 0.0
    %956 = vmatpush1.msra.mxu0 0.0
    %957 = vmatprep.subr.mxu0 0.0
    %958 = vmatpush1.msra.mxu0 0.0
    %959 = vmatprep.subr.mxu0 0.0
    %960 = vmatpush1.msra.mxu0 0.0
    %961 = vmatprep.subr.mxu0 0.0
    %962 = vmatpush1.msra.mxu0 0.0
    %963 = vmatprep.subr.mxu0 0.0
    %964 = vmatpush1.msra.mxu0 0.0
    %965 = vmatprep.subr.mxu0 0.0
    %966 = vmatpush1.msra.mxu0 0.0
    %967 = vmatprep.subr.mxu0 0.0
    %968 = vmatpush1.msra.mxu0 0.0
    %969 = vmatprep.subr.mxu0 0.0
    %970 = vmatpush1.msra.mxu0 0.0
    %971 = vmatprep.subr.mxu0 0.0
    %972 = vmatpush1.msra.mxu0 0.0
    %973 = vmatprep.subr.mxu0 0.0
    %974 = vmatpush1.msra.mxu0 0.0
    %975 = vmatprep.subr.mxu0 0.0
    %976 = vmatpush1.msra.mxu0 0.0
    %977 = vmatprep.subr.mxu0 0.0
    %978 = vmatpush1.msra.mxu0 0.0
    %979 = vmatprep.subr.mxu0 0.0
    %980 = vmatpush1.msra.mxu0 0.0
    %981 = vmatprep.subr.mxu0 0.0
    %982 = vmatpush1.msra.mxu0 0.0
    %983 = vmatprep.subr.mxu0 0.0
    %984 = vmatpush1.msra.mxu0 0.0
    %985 = vmatprep.subr.mxu0 0.0
    %986 = vmatpush1.msra.mxu0 0.0
    %987 = vmatprep.subr.mxu0 0.0
    %988 = vmatpush1.msra.mxu0 0.0
    %989 = vmatprep.subr.mxu0 0.0
    %990 = vmatpush1.msra.mxu0 0.0
    %991 = vmatprep.subr.mxu0 0.0
    %992 = vmatpush1.msra.mxu0 0.0
    %993 = vmatprep.subr.mxu0 0.0
    %994 = vmatpush1.msra.mxu0 0.0
    %995 = vmatprep.subr.mxu0 0.0
    %996 = vmatpush1.msra.mxu0 0.0
    %997 = vmatprep.subr.mxu0 0.0
    %998 = vmatpush1.msra.mxu0 0.0
    %999 = vmatprep.subr.mxu0 0.0
    %1000 = vmatpush1.msra.mxu0 0.0
    %1001 = vmatprep.subr.mxu0 0.0
    %1002 = vmatpush1.msra.mxu0 0.0
    %1003 = vmatprep.subr.mxu0 0.0
    %1004 = vmatpush1.msra.mxu0 0.0
    %1005 = vmatprep.subr.mxu0 0.0
    %1006 = vmatpush1.msra.mxu0 0.0
    %1007 = vmatprep.subr.mxu0 0.0
    %1008 = vmatpush1.msra.mxu0 0.0
    %1009 = vmatprep.mubr.f32.mxu0 0.0
    %1010 = vmatmul.mubr.f32.gmra.mrb[0].mxu0 %v934
    %v1011 = vpop.f32.mrb[0].mxu0
    %v1012 = vadd.f32 %v931, %v1011
    %v1013 = vpop.f32.mrb[0].mxu0
    %1014 = vmatprep.mubr.f32.mxu0 0.0
    %1015 = vmatmul.mubr.f32.gmra.mrb[0].mxu0 %v937
    %v1016 = vpop.f32.mrb[0].mxu0
    %v1017 = vadd.f32 %v931, %v1016
    %v1018 = vpop.f32.mrb[0].mxu0
    %1019 = vmatprep.mubr.f32.mxu0 0.0
    %1020 = vmatmul.mubr.f32.gmra.mrb[0].mxu0 %v940
    %v1021 = vpop.f32.mrb[0].mxu0
    %v1022 = vadd.f32 %v931, %v1021
    %v1023 = vpop.f32.mrb[0].mxu0
    %1024 = vmatprep.mubr.f32.mxu0 0.0
    %1025 = vmatmul.mubr.f32.gmra.mrb[0].mxu0 %v943
    %v1026 = vpop.f32.mrb[0].mxu0
    %v1027 = vadd.f32 %v931, %v1026
    %v1028 = vpop.f32.mrb[0].mxu0
    %1029 = vdwg.mxu0
    %v1030 = vmax.f32 %v1012, 0.0
    %v1031 = vmax.f32 %v1017, 0.0
    %v1032 = vmax.f32 %v1022, 0.0
    %v1033 = vmax.f32 %v1027, 0.0
    %v1034 = vld [vmem:[%s13] sm:$0xff]
    %v1035 = vld [vmem:[%s13 + $0x8] sm:$0xff]
    %v1036 = vld [vmem:[%s13 + $0x10] sm:$0xff]
    %v1037 = vld [vmem:[%s14] sm:$0x1]
    %v1042 = vrot.slane %v1030, 4
    %v1043 = vrot.slane %v1031, 4
    %v1044 = vsel %vm147, %v1042, %v1043
    %v1045 = vrot.slane %v1032, 4
    %v1046 = vrot.slane %v1033, 4
    %v1047 = vsel %vm147, %v1045, %v1046
    %v1050 = vsel %vm147, 0.0, %v1042
    %v1051 = vsel %vm147, 0.0, %v1045
    %1054 = vrot.lane.b32.xlu0 %v1050, 8
    %v1055 = vpop.permute.xlu0 %1054
    %1056 = vrot.lane.b32.xlu0 %v1044, 8
    %v1057 = vpop.permute.xlu0 %1056
    %1058 = vrot.lane.b32.xlu0 %v1051, 8
    %v1059 = vpop.permute.xlu0 %1058
    %1060 = vrot.lane.b32.xlu0 %v1047, 8
    %v1061 = vpop.permute.xlu0 %1060
    %1066 = vrot.lane.b32.xlu0 %v1030, 16
    %v1067 = vpop.permute.xlu0 %1066
    %1068 = vrot.lane.b32.xlu0 %v1031, 16
    %v1069 = vpop.permute.xlu0 %1068
    %1070 = vrot.lane.b32.xlu0 %v1032, 16
    %v1071 = vpop.permute.xlu0 %1070
    %1072 = vrot.lane.b32.xlu0 %v1033, 16
    %v1073 = vpop.permute.xlu0 %1072
    %v1078 = vsel %vm123, 0.0, %v1055
    %v1079 = vsel %vm123, %v1030, %v1057
    %v1080 = vsel %vm123, 0.0, %v1059
    %v1081 = vsel %vm123, %v1032, %v1061
    %v1082 = vsel %vm300, %v1078, %v1067
    %v1083 = vsel %vm300, %v1079, %v1069
    %v1084 = vsel %vm300, %v1080, %v1071
    %v1085 = vsel %vm300, %v1081, %v1073
    %v1087 = vlaneseq
    %v1088 = vshrl.u32 %v1087, 7
    %v1089 = vsub.s32 0, %v1088
    %v1090 = vrot.slane %v1037, %v1089
    %v1093 = vsel %vm311, %v1082, 0
    %v1096 = vsel %vm311, %v1083, 0
    %v1099 = vsel %vm311, %v1084, 0
    %v1102 = vsel %vm311, %v1085, 0
    %1104 = vmatprep.subr.mxu0 0.0
    %1105 = vmatpush1.msra.mxu0 %v1034
    %1106 = vmatprep.subr.mxu0 0.0
    %1107 = vmatpush1.msra.mxu0 %v1035
    %1108 = vmatprep.subr.mxu0 0.0
    %1109 = vmatpush1.msra.mxu0 %v1036
    %1110 = vmatprep.subr.mxu0 0.0
    %1111 = vmatpush1.msra.mxu0 0.0
    %1112 = vmatprep.subr.mxu0 0.0
    %1113 = vmatpush1.msra.mxu0 0.0
    %1114 = vmatprep.subr.mxu0 0.0
    %1115 = vmatpush1.msra.mxu0 0.0
    %1116 = vmatprep.subr.mxu0 0.0
    %1117 = vmatpush1.msra.mxu0 0.0
    %1118 = vmatprep.subr.mxu0 0.0
    %1119 = vmatpush1.msra.mxu0 0.0
    %1120 = vmatprep.subr.mxu0 0.0
    %1121 = vmatpush1.msra.mxu0 0.0
    %1122 = vmatprep.subr.mxu0 0.0
    %1123 = vmatpush1.msra.mxu0 0.0
    %1124 = vmatprep.subr.mxu0 0.0
    %1125 = vmatpush1.msra.mxu0 0.0
    %1126 = vmatprep.subr.mxu0 0.0
    %1127 = vmatpush1.msra.mxu0 0.0
    %1128 = vmatprep.subr.mxu0 0.0
    %1129 = vmatpush1.msra.mxu0 0.0
    %1130 = vmatprep.subr.mxu0 0.0
    %1131 = vmatpush1.msra.mxu0 0.0
    %1132 = vmatprep.subr.mxu0 0.0
    %1133 = vmatpush1.msra.mxu0 0.0
    %1134 = vmatprep.subr.mxu0 0.0
    %1135 = vmatpush1.msra.mxu0 0.0
    %1136 = vmatprep.subr.mxu0 0.0
    %1137 = vmatpush1.msra.mxu0 0.0
    %1138 = vmatprep.subr.mxu0 0.0
    %1139 = vmatpush1.msra.mxu0 0.0
    %1140 = vmatprep.subr.mxu0 0.0
    %1141 = vmatpush1.msra.mxu0 0.0
    %1142 = vmatprep.subr.mxu0 0.0
    %1143 = vmatpush1.msra.mxu0 0.0
    %1144 = vmatprep.subr.mxu0 0.0
    %1145 = vmatpush1.msra.mxu0 0.0
    %1146 = vmatprep.subr.mxu0 0.0
    %1147 = vmatpush1.msra.mxu0 0.0
    %1148 = vmatprep.subr.mxu0 0.0
    %1149 = vmatpush1.msra.mxu0 0.0
    %1150 = vmatprep.subr.mxu0 0.0
    %1151 = vmatpush1.msra.mxu0 0.0
    %1152 = vmatprep.subr.mxu0 0.0
    %1153 = vmatpush1.msra.mxu0 0.0
    %1154 = vmatprep.subr.mxu0 0.0
    %1155 = vmatpush1.msra.mxu0 0.0
    %1156 = vmatprep.subr.mxu0 0.0
    %1157 = vmatpush1.msra.mxu0 0.0
    %1158 = vmatprep.subr.mxu0 0.0
    %1159 = vmatpush1.msra.mxu0 0.0
    %1160 = vmatprep.subr.mxu0 0.0
    %1161 = vmatpush1.msra.mxu0 0.0
    %1162 = vmatprep.subr.mxu0 0.0
    %1163 = vmatpush1.msra.mxu0 0.0
    %1164 = vmatprep.subr.mxu0 0.0
    %1165 = vmatpush1.msra.mxu0 0.0
    %1166 = vmatprep.subr.mxu0 0.0
    %1167 = vmatpush1.msra.mxu0 0.0
    %1168 = vmatprep.mubr.f32.mxu0 0.0
    %1169 = vmatmul.mubr.f32.gmra.mrb[0].mxu0 %v1093
    %v1170 = vpop.f32.mrb[0].mxu0
    %v1171 = vpop.f32.mrb[0].mxu0
    %1172 = vmatprep.mubr.f32.mxu0 0.0
    %1173 = vmatmul.mubr.f32.gmra.mrb[0].mxu0 %v1096
    %v1174 = vpop.f32.mrb[0].mxu0
    %v1175 = vadd.f32 %v1090, %v1174
    %v1176 = vpop.f32.mrb[0].mxu0
    %1177 = vmatprep.mubr.f32.mxu0 0.0
    %1178 = vmatmul.mubr.f32.gmra.mrb[0].mxu0 %v1099
    %v1179 = vpop.f32.mrb[0].mxu0
    %v1180 = vpop.f32.mrb[0].mxu0
    %1181 = vmatprep.mubr.f32.mxu0 0.0
    %1182 = vmatmul.mubr.f32.gmra.mrb[0].mxu0 %v1102
    %v1183 = vpop.f32.mrb[0].mxu0
    %v1184 = vadd.f32 %v1090, %v1183
    %v1185 = vpop.f32.mrb[0].mxu0
    %1186 = vdwg.mxu0
    %v1187 = vmax.f32 %v1175, 0.0
    %v1188 = vmax.f32 %v1184, 0.0
    %v1189 = vadd.f32 %v1187, %v872
    %v1190 = vadd.f32 %v1188, %v874
    %v1191 = vmax.f32 %v1189, 0.0
    %v1192 = vmax.f32 %v1190, 0.0
    %v1193 = vld [vmem:[%s15] sm:$0xff]
    %v1194 = vld [vmem:[%s16] sm:$0x1]
    %v1196 = vlaneseq
    %v1197 = vshrl.u32 %v1196, 7
    %v1198 = vsub.s32 0, %v1197
    %v1199 = vrot.slane %v1194, %v1198
    %v1203 = vrot.slane %v1191, 7
    %v1204 = vrot.slane %v1192, 6
    %vm1205 = vcmask 1041409
    %v1206 = vsel %vm1205, %v1204, %v1203
    %v1207 = vsel %vm123, %v1206, 0
    %1209 = vmatprep.subr.mxu0 0.0
    %1210 = vmatpush1.msra.mxu0 %v1193
    %1211 = vmatprep.subr.mxu0 0.0
    %1212 = vmatpush1.msra.mxu0 0.0
    %1213 = vmatprep.subr.mxu0 0.0
    %1214 = vmatpush1.msra.mxu0 0.0
    %1215 = vmatprep.subr.mxu0 0.0
    %1216 = vmatpush1.msra.mxu0 0.0
    %1217 = vmatprep.subr.mxu0 0.0
    %1218 = vmatpush1.msra.mxu0 0.0
    %1219 = vmatprep.subr.mxu0 0.0
    %1220 = vmatpush1.msra.mxu0 0.0
    %1221 = vmatprep.subr.mxu0 0.0
    %1222 = vmatpush1.msra.mxu0 0.0
    %1223 = vmatprep.subr.mxu0 0.0
    %1224 = vmatpush1.msra.mxu0 0.0
    %1225 = vmatprep.subr.mxu0 0.0
    %1226 = vmatpush1.msra.mxu0 0.0
    %1227 = vmatprep.subr.mxu0 0.0
    %1228 = vmatpush1.msra.mxu0 0.0
    %1229 = vmatprep.subr.mxu0 0.0
    %1230 = vmatpush1.msra.mxu0 0.0
    %1231 = vmatprep.subr.mxu0 0.0
    %1232 = vmatpush1.msra.mxu0 0.0
    %1233 = vmatprep.subr.mxu0 0.0
    %1234 = vmatpush1.msra.mxu0 0.0
    %1235 = vmatprep.subr.mxu0 0.0
    %1236 = vmatpush1.msra.mxu0 0.0
    %1237 = vmatprep.subr.mxu0 0.0
    %1238 = vmatpush1.msra.mxu0 0.0
    %1239 = vmatprep.subr.mxu0 0.0
    %1240 = vmatpush1.msra.mxu0 0.0
    %1241 = vmatprep.subr.mxu0 0.0
    %1242 = vmatpush1.msra.mxu0 0.0
    %1243 = vmatprep.subr.mxu0 0.0
    %1244 = vmatpush1.msra.mxu0 0.0
    %1245 = vmatprep.subr.mxu0 0.0
    %1246 = vmatpush1.msra.mxu0 0.0
    %1247 = vmatprep.subr.mxu0 0.0
    %1248 = vmatpush1.msra.mxu0 0.0
    %1249 = vmatprep.subr.mxu0 0.0
    %1250 = vmatpush1.msra.mxu0 0.0
    %1251 = vmatprep.subr.mxu0 0.0
    %1252 = vmatpush1.msra.mxu0 0.0
    %1253 = vmatprep.subr.mxu0 0.0
    %1254 = vmatpush1.msra.mxu0 0.0
    %1255 = vmatprep.subr.mxu0 0.0
    %1256 = vmatpush1.msra.mxu0 0.0
    %1257 = vmatprep.subr.mxu0 0.0
    %1258 = vmatpush1.msra.mxu0 0.0
    %1259 = vmatprep.subr.mxu0 0.0
    %1260 = vmatpush1.msra.mxu0 0.0
    %1261 = vmatprep.subr.mxu0 0.0
    %1262 = vmatpush1.msra.mxu0 0.0
    %1263 = vmatprep.subr.mxu0 0.0
    %1264 = vmatpush1.msra.mxu0 0.0
    %1265 = vmatprep.subr.mxu0 0.0
    %1266 = vmatpush1.msra.mxu0 0.0
    %1267 = vmatprep.subr.mxu0 0.0
    %1268 = vmatpush1.msra.mxu0 0.0
    %1269 = vmatprep.subr.mxu0 0.0
    %1270 = vmatpush1.msra.mxu0 0.0
    %1271 = vmatprep.subr.mxu0 0.0
    %1272 = vmatpush1.msra.mxu0 0.0
    %1273 = vmatprep.mubr.f32.mxu0 0.0
    %1274 = vmatmul.mubr.f32.gmra.mrb[0].mxu0 %v1207
    %v1275 = vpop.f32.mrb[0].mxu0
    %v1276 = vadd.f32 %v1199, %v1275
    %v1277 = vpop.f32.mrb[0].mxu0
    %1278 = vdwg.mxu0
    %vm1279 = vcmask 74752
    %v1280 = vsel %vm1279, %v1276, -inf
    %1281 = vmax.xlane.f32.xlu0 %v1280
    %v1282 = vpop.xlane.xlu0 %1281
    %v1283 = vsub.f32 %v1276, %v1282
    %v1284 = vmul.f32 %v1283, 1.442695
    %v1285 = vpow.pop %v1284
    %v1286 = vsel %vm1279, %v1285, 0.0
    %1287 = vadd.xlane.f32.xlu0 %v1286
    %v1288 = vpop.xlane.xlu0 %1287
    %v1289 = vlog2.pop %v1288
    %v1290 = vmul.f32 %v1289, 0.6931472
    %v1291 = vsub.f32 %v1283, %v1290
    %1292 = vst.msk [vmem:[#allocation2] sm:$0x3] %vm1279, %v1291
    // Predicated region
    $region70: #{tpu_custom_call.1} parent=1 // pred_check
      _
    $region71: #{tpu_custom_call.1} parent=1 // pred_check_branch
      %1294 = sbr.rel (0) target = $region73
    $region72: #{tpu_custom_call.1} parent=1 // pred_region
      %s1296 = ssub.s32 32, 32
      %1297 = vsyncadd [#allocation3], %s1296
      %s1299 = sshll.u32 [#allocation2], 4
      %s1300 = int_to_ptr.vmem [resolvable:$true] %s1299
      %1302 = dma.vmem_to_hbm [thread:$0]  %s1300, 32, %s17, [#allocation3]
    $region73: #{tpu_custom_call.1} parent=1 // pred_fallthru
      _
    // Predicated region
    $region74: #{tpu_custom_call.1} parent=1 // pred_check
      _
    $region75: #{tpu_custom_call.1} parent=1 // pred_check_branch
      %1304 = sbr.rel (0) target = $region77
    $region76: #{tpu_custom_call.1} parent=1 // pred_region
      %1305 = dma.done [#allocation3], 32
    $region77: #{tpu_custom_call.1} parent=1 // pred_fallthru
      _
    %1306 = vsyncpa [#allocation3], 1

</llo_original>
